<compile_context>
chip_gen: v6e
topology: v6e:2x2x1
jax: 0.10.0
libtpu: 0.0.40
codegen_flags: <defaults>
</compile_context>

<pallas_src>
import functools

import jax
import jax.numpy as jnp
from jax.experimental import pallas as pl
from jax.experimental.pallas import tpu as pltpu


# ----------------------------------------------------------------------------
# Pallas kernel: fused 3-layer MLP (split first matmul, bias + ReLU x2)
# + final linear into lane-padded logits + log_softmax per edge tile.
# ----------------------------------------------------------------------------
def _mlp_logsoftmax_kernel(xf_ref, xt_ref, w1a_ref, w1b_ref, b1_ref,
                           w2_ref, b2_ref, w3_ref, b3_ref, o_ref):
    # Hoist bias loads (avoid re-emitting broadcasts).
    b1 = b1_ref[...]                                                  # (1, H1) f32
    b2 = b2_ref[...]                                                  # (1, H2) f32
    b3 = b3_ref[...]                                                  # (1, OUT_PAD) f32

    # Layer 1: concat-free — two K=D matmuls into the same f32 accumulator.
    h = jnp.dot(xf_ref[...], w1a_ref[...], preferred_element_type=jnp.float32)
    h = h + jnp.dot(xt_ref[...], w1b_ref[...], preferred_element_type=jnp.float32)
    h = jnp.maximum(h + b1, 0.0)                                      # ReLU (f32)

    # Layer 2.
    h = jnp.dot(h.astype(jnp.bfloat16), w2_ref[...],
                preferred_element_type=jnp.float32)
    h = jnp.maximum(h + b2, 0.0)                                      # ReLU (f32)

    # Layer 3 (output, lane-padded to multiple of 128; pad bias = -1e30).
    logits = jnp.dot(h.astype(jnp.bfloat16), w3_ref[...],
                     preferred_element_type=jnp.float32)
    logits = logits + b3                                              # (TE, OUT_PAD)

    # Numerically stable log_softmax (pad columns are <= -1e30, so they do not
    # perturb the max or the sum; exp underflows cleanly to 0, no inf-inf).
    m = jnp.max(logits, axis=-1, keepdims=True)
    shifted = logits - m
    lse = jnp.log(jnp.sum(jnp.exp(shifted), axis=-1, keepdims=True))
    o_ref[...] = (shifted - lse).astype(o_ref.dtype)


def _mlp_pallas(from_emb, to_emb, w1_top, w1_bot, b1, w2, b2, w3p, b3p,
                *, tile_e=1024):
    """from_emb/to_emb: [E_pad, D] bf16; weights bf16; biases f32; w3p/b3p lane-padded."""
    E_pad, D = from_emb.shape
    H1 = w1_top.shape[1]
    H2 = w2.shape[1]
    OUT_PAD = w3p.shape[1]

    tile = max(8, (min(tile_e, E_pad) // 8) * 8)
    assert E_pad % tile == 0  # wrapper guarantees this via padding

    grid = (E_pad // tile,)
    wmap = lambda i: (0, 0)   # weights / biases: same resident block every step
    emap = lambda i: (i, 0)   # edge tiles march along the first axis

    # Advisory cost estimate for XLA scheduling around the custom call.
    flops = 2 * E_pad * (2 * D * H1 + H1 * H2 + H2 * OUT_PAD)
    transcendentals = E_pad * OUT_PAD                       # exp in log_softmax
    bytes_accessed = (2 * E_pad * D * 2                     # bf16 edge streams
                      + E_pad * OUT_PAD * 4                 # f32 output
                      + (2 * D * H1 + H1 * H2 + H2 * OUT_PAD) * 2
                      + (H1 + H2 + OUT_PAD) * 4)

    return pl.pallas_call(
        _mlp_logsoftmax_kernel,
        out_shape=jax.ShapeDtypeStruct((E_pad, OUT_PAD), jnp.float32),
        grid=grid,
        in_specs=[
            pl.BlockSpec((tile, D), emap),          # from-node embeddings (bf16)
            pl.BlockSpec((tile, D), emap),          # to-node embeddings   (bf16)
            pl.BlockSpec((D, H1), wmap),            # W1 top half
            pl.BlockSpec((D, H1), wmap),            # W1 bottom half
            pl.BlockSpec((1, H1), wmap),            # b1
            pl.BlockSpec((H1, H2), wmap),           # W2
            pl.BlockSpec((1, H2), wmap),            # b2
            pl.BlockSpec((H2, OUT_PAD), wmap),      # W3 (lane-padded)
            pl.BlockSpec((1, OUT_PAD), wmap),       # b3 (lane-padded, -1e30 pads)
        ],
        out_specs=pl.BlockSpec((tile, OUT_PAD), emap),
        compiler_params=pltpu.CompilerParams(
            dimension_semantics=("parallel",),
            vmem_limit_bytes=32 * 1024 * 1024,      # safe on v5e/v6e/v7x
        ),
        cost_estimate=pl.CostEstimate(
            flops=int(flops),
            transcendentals=int(transcendentals),
            bytes_accessed=int(bytes_accessed),
        ),
    )(from_emb, to_emb, w1_top, w1_bot, b1, w2, b2, w3p, b3p)


# ----------------------------------------------------------------------------
# Wrapper reproducing HomogeneousEdgePredictionClassifier.forward
# ----------------------------------------------------------------------------
@functools.partial(jax.jit, static_argnames=("tile_e",))
def homogeneous_edge_prediction_classifier(encoder_output, edge_index, params,
                                           *, tile_e=1024):
    D = encoder_output.shape[1]
    E = edge_index.shape[1]
    OUT = params["w3"].shape[1]

    # Gather endpoint embeddings (plain-JAX glue) and cast matmul operands to
    # bf16 at the boundary; NO concat — the two streams stay separate.
    row = edge_index[0]
    col = edge_index[1]
    from_emb = jnp.take(encoder_output, row, axis=0).astype(jnp.bfloat16)  # [E, D]
    to_emb = jnp.take(encoder_output, col, axis=0).astype(jnp.bfloat16)    # [E, D]

    # Tile / pad edges so the grid is pl.cdiv-based (no divisibility assert).
    tile = max(8, (min(tile_e, max(8, pl.next_power_of_2(E))) // 8) * 8)
    E_pad = pl.cdiv(E, tile) * tile
    if E_pad != E:
        pad = E_pad - E
        from_emb = jnp.pad(from_emb, ((0, pad), (0, 0)))
        to_emb = jnp.pad(to_emb, ((0, pad), (0, 0)))

    # Weight prep: split W1 (concat-free layer 1), cast to bf16, lane-pad W3/b3.
    w1 = params["w1"].astype(jnp.bfloat16)
    w1_top, w1_bot = w1[:D], w1[D:]
    w2 = params["w2"].astype(jnp.bfloat16)
    b1 = params["b1"].astype(jnp.float32)
    b2 = params["b2"].astype(jnp.float32)

    OUT_PAD = pl.cdiv(OUT, 128) * 128
    w3p = jnp.pad(params["w3"].astype(jnp.bfloat16),
                  ((0, 0), (0, OUT_PAD - OUT)))                       # zeros
    b3p = jnp.pad(params["b3"].astype(jnp.float32),
                  ((0, 0), (0, OUT_PAD - OUT)),
                  constant_values=-1e30)                              # finite, huge-neg

    # TODO(synk): dropout (module default p=0) is an inference no-op, omitted.
    out = _mlp_pallas(from_emb, to_emb, w1_top, w1_bot, b1, w2, b2, w3p, b3p,
                      tile_e=tile)
    return out[:E, :OUT]


# ----------------------------------------------------------------------------
# Pure-JAX f32 reference for verification
# ----------------------------------------------------------------------------
def _reference(encoder_output, edge_index, params):
    row, col = edge_index[0], edge_index[1]
    feats = jnp.concatenate([encoder_output[row], encoder_output[col]], axis=-1)
    h = jnp.maximum(feats @ params["w1"] + params["b1"], 0.0)
    h = jnp.maximum(h @ params["w2"] + params["b2"], 0.0)
    logits = h @ params["w3"] + params["b3"]
    return jax.nn.log_softmax(logits, axis=-1)


if __name__ == "__main__":
    key = jax.random.PRNGKey(0)

    # Small deterministic problem:
    #   N = 32 nodes, D = 16 node-embedding dim  ->  MLP in_channels = 32
    #   hidden layers = [64, 32], output_size = 8, E = 200 edges (not a
    #   multiple of the tile -> exercises the padded last tile).
    N, D = 32, 16
    E = 200
    IN, H1, H2, OUT = 2 * D, 64, 32, 8

    k_enc, k_ei, k1, k2, k3 = jax.random.split(key, 5)

    encoder_output = jax.random.normal(k_enc, (N, D), dtype=jnp.float32)
    edge_index = jax.random.randint(k_ei, (2, E), 0, N, dtype=jnp.int32)

    def _init_linear(k, fan_in, fan_out):
        kw, kb = jax.random.split(k)
        bound = 1.0 / jnp.sqrt(fan_in)
        w = jax.random.uniform(kw, (fan_in, fan_out), jnp.float32, -bound, bound)
        b = jax.random.uniform(kb, (1, fan_out), jnp.float32, -bound, bound)
        return w, b

    w1, b1 = _init_linear(k1, IN, H1)
    w2, b2 = _init_linear(k2, H1, H2)
    w3, b3 = _init_linear(k3, H2, OUT)
    params = dict(w1=w1, b1=b1, w2=w2, b2=b2, w3=w3, b3=b3)

    out = homogeneous_edge_prediction_classifier(encoder_output, edge_index,
                                                 params)
    out = jax.block_until_ready(out)

    ref = _reference(encoder_output, edge_index, params)
    assert out.shape == (E, OUT)
    # bf16 matmul operands -> loose tolerance vs. the f32 reference.
    assert jnp.allclose(out, ref, atol=5e-2, rtol=0.0), "mismatch vs reference"

    print("KERNEL_OK")
</pallas_src>

<mosaic_0001>
module attributes {stable_mosaic.version = 11 : i64} {
  func.func @_mlp_logsoftmax_kernel(%arg0: i32, %arg1: memref<256x16xbf16, #tpu.memory_space<vmem>>, %arg2: memref<256x16xbf16, #tpu.memory_space<vmem>>, %arg3: memref<16x64xbf16, #tpu.memory_space<vmem>>, %arg4: memref<16x64xbf16, #tpu.memory_space<vmem>>, %arg5: memref<1x64xf32, #tpu.memory_space<vmem>>, %arg6: memref<64x32xbf16, #tpu.memory_space<vmem>>, %arg7: memref<1x32xf32, #tpu.memory_space<vmem>>, %arg8: memref<32x128xbf16, #tpu.memory_space<vmem>>, %arg9: memref<1x128xf32, #tpu.memory_space<vmem>>, %arg10: memref<256x128xf32, #tpu.memory_space<vmem>>) attributes {dimension_semantics = [#tpu.dimension_semantics<parallel>], iteration_bounds = array<i64: 1>, scalar_prefetch = 0 : i64, scratch_operands = 0 : i64, tpu.core_type = #tpu.core_type<tc>, window_params = [{transform_indices = @transform_0, window_bounds = array<i64: 256, 16>}, {transform_indices = @transform_1, window_bounds = array<i64: 256, 16>}, {pipeline_mode = #tpu.pipeline_mode<synchronous>, transform_indices = @transform_2, window_bounds = array<i64: 16, 64>}, {pipeline_mode = #tpu.pipeline_mode<synchronous>, transform_indices = @transform_3, window_bounds = array<i64: 16, 64>}, {pipeline_mode = #tpu.pipeline_mode<synchronous>, transform_indices = @transform_4, window_bounds = array<i64: 1, 64>}, {pipeline_mode = #tpu.pipeline_mode<synchronous>, transform_indices = @transform_5, window_bounds = array<i64: 64, 32>}, {pipeline_mode = #tpu.pipeline_mode<synchronous>, transform_indices = @transform_6, window_bounds = array<i64: 1, 32>}, {pipeline_mode = #tpu.pipeline_mode<synchronous>, transform_indices = @transform_7, window_bounds = array<i64: 32, 128>}, {pipeline_mode = #tpu.pipeline_mode<synchronous>, transform_indices = @transform_8, window_bounds = array<i64: 1, 128>}, {transform_indices = @transform_9, window_bounds = array<i64: 256, 128>}]} {
    %c0 = arith.constant 0 : index
    %c0_0 = arith.constant 0 : index
    %0 = vector.load %arg5[%c0, %c0_0] : memref<1x64xf32, #tpu.memory_space<vmem>>, vector<1x64xf32>
    %c0_1 = arith.constant 0 : index
    %c0_2 = arith.constant 0 : index
    %1 = vector.load %arg7[%c0_1, %c0_2] : memref<1x32xf32, #tpu.memory_space<vmem>>, vector<1x32xf32>
    %c0_3 = arith.constant 0 : index
    %c0_4 = arith.constant 0 : index
    %2 = vector.load %arg9[%c0_3, %c0_4] : memref<1x128xf32, #tpu.memory_space<vmem>>, vector<1x128xf32>
    %c0_5 = arith.constant 0 : index
    %c0_6 = arith.constant 0 : index
    %3 = vector.load %arg1[%c0_5, %c0_6] : memref<256x16xbf16, #tpu.memory_space<vmem>>, vector<256x16xbf16>
    %c0_7 = arith.constant 0 : index
    %c0_8 = arith.constant 0 : index
    %4 = vector.load %arg3[%c0_7, %c0_8] : memref<16x64xbf16, #tpu.memory_space<vmem>>, vector<16x64xbf16>
    %cst = arith.constant dense<0.000000e+00> : vector<256x64xf32>
    %5 = tpu.matmul %3, %4, %cst {dimension_numbers = #tpu.dot_dimension_numbers<[1], [0], [0], [1], [0, 0, 1, 1], [], []>} : vector<256x16xbf16>, vector<16x64xbf16>, vector<256x64xf32> -> vector<256x64xf32>
    %c0_9 = arith.constant 0 : index
    %c0_10 = arith.constant 0 : index
    %6 = vector.load %arg2[%c0_9, %c0_10] : memref<256x16xbf16, #tpu.memory_space<vmem>>, vector<256x16xbf16>
    %c0_11 = arith.constant 0 : index
    %c0_12 = arith.constant 0 : index
    %7 = vector.load %arg4[%c0_11, %c0_12] : memref<16x64xbf16, #tpu.memory_space<vmem>>, vector<16x64xbf16>
    %cst_13 = arith.constant dense<0.000000e+00> : vector<256x64xf32>
    %8 = tpu.matmul %6, %7, %cst_13 {dimension_numbers = #tpu.dot_dimension_numbers<[1], [0], [0], [1], [0, 0, 1, 1], [], []>} : vector<256x16xbf16>, vector<16x64xbf16>, vector<256x64xf32> -> vector<256x64xf32>
    %9 = arith.addf %5, %8 : vector<256x64xf32>
    %10 = vector.broadcast %0 : vector<1x64xf32> to vector<256x64xf32>
    %11 = arith.addf %9, %10 : vector<256x64xf32>
    %cst_14 = arith.constant 0.000000e+00 : f32
    %12 = vector.broadcast %cst_14 : f32 to vector<256x64xf32>
    %13 = arith.maximumf %11, %12 : vector<256x64xf32>
    %14 = arith.truncf %13 : vector<256x64xf32> to vector<256x64xbf16>
    %c0_15 = arith.constant 0 : index
    %c0_16 = arith.constant 0 : index
    %15 = vector.load %arg6[%c0_15, %c0_16] : memref<64x32xbf16, #tpu.memory_space<vmem>>, vector<64x32xbf16>
    %cst_17 = arith.constant dense<0.000000e+00> : vector<256x32xf32>
    %16 = tpu.matmul %14, %15, %cst_17 {dimension_numbers = #tpu.dot_dimension_numbers<[1], [0], [0], [1], [0, 0, 1, 1], [], []>} : vector<256x64xbf16>, vector<64x32xbf16>, vector<256x32xf32> -> vector<256x32xf32>
    %17 = vector.broadcast %1 : vector<1x32xf32> to vector<256x32xf32>
    %18 = arith.addf %16, %17 : vector<256x32xf32>
    %cst_18 = arith.constant 0.000000e+00 : f32
    %19 = vector.broadcast %cst_18 : f32 to vector<256x32xf32>
    %20 = arith.maximumf %18, %19 : vector<256x32xf32>
    %21 = arith.truncf %20 : vector<256x32xf32> to vector<256x32xbf16>
    %c0_19 = arith.constant 0 : index
    %c0_20 = arith.constant 0 : index
    %22 = vector.load %arg8[%c0_19, %c0_20] : memref<32x128xbf16, #tpu.memory_space<vmem>>, vector<32x128xbf16>
    %cst_21 = arith.constant dense<0.000000e+00> : vector<256x128xf32>
    %23 = tpu.matmul %21, %22, %cst_21 {dimension_numbers = #tpu.dot_dimension_numbers<[1], [0], [0], [1], [0, 0, 1, 1], [], []>} : vector<256x32xbf16>, vector<32x128xbf16>, vector<256x128xf32> -> vector<256x128xf32>
    %24 = vector.broadcast %2 : vector<1x128xf32> to vector<256x128xf32>
    %25 = arith.addf %23, %24 : vector<256x128xf32>
    %cst_22 = arith.constant dense<0xFF800000> : vector<256xf32>
    %26 = vector.multi_reduction <maximumf>, %25, %cst_22 [1] : vector<256x128xf32> to vector<256xf32>
    %27 = vector.shape_cast %26 : vector<256xf32> to vector<256x1xf32>
    %28 = vector.broadcast %27 : vector<256x1xf32> to vector<256x128xf32>
    %29 = arith.subf %25, %28 : vector<256x128xf32>
    %30 = math.exp %29 : vector<256x128xf32>
    %cst_23 = arith.constant dense<0.000000e+00> : vector<256xf32>
    %31 = vector.multi_reduction <add>, %30, %cst_23 [1] : vector<256x128xf32> to vector<256xf32>
    %32 = vector.shape_cast %31 : vector<256xf32> to vector<256x1xf32>
    %33 = math.log %32 : vector<256x1xf32>
    %34 = vector.broadcast %33 : vector<256x1xf32> to vector<256x128xf32>
    %35 = arith.subf %29, %34 : vector<256x128xf32>
    %c0_24 = arith.constant 0 : index
    %c0_25 = arith.constant 0 : index
    %36 = vector.load %arg10[%c0_24, %c0_25] : memref<256x128xf32, #tpu.memory_space<vmem>>, vector<256x128xf32>
    tpu.vector_store %arg10[%c0_24, %c0_25], %35 {strides = array<i32>} : memref<256x128xf32, #tpu.memory_space<vmem>>, vector<256x128xf32>,
    return
  }
  func.func @transform_0(%arg0: i32) -> (i32, i32) {
    %c0_i32 = arith.constant 0 : i32
    %c0_i32_0 = arith.constant 0 : i32
    return %arg0, %c0_i32 : i32, i32
  }
  func.func @transform_1(%arg0: i32) -> (i32, i32) {
    %c0_i32 = arith.constant 0 : i32
    %c0_i32_0 = arith.constant 0 : i32
    return %arg0, %c0_i32 : i32, i32
  }
  func.func @transform_2(%arg0: i32) -> (i32, i32) {
    %c0_i32 = arith.constant 0 : i32
    %c0_i32_0 = arith.constant 0 : i32
    %c0_i32_1 = arith.constant 0 : i32
    return %c0_i32, %c0_i32_0 : i32, i32
  }
  func.func @transform_3(%arg0: i32) -> (i32, i32) {
    %c0_i32 = arith.constant 0 : i32
    %c0_i32_0 = arith.constant 0 : i32
    %c0_i32_1 = arith.constant 0 : i32
    return %c0_i32, %c0_i32_0 : i32, i32
  }
  func.func @transform_4(%arg0: i32) -> (i32, i32) {
    %c0_i32 = arith.constant 0 : i32
    %c0_i32_0 = arith.constant 0 : i32
    %c0_i32_1 = arith.constant 0 : i32
    return %c0_i32, %c0_i32_0 : i32, i32
  }
  func.func @transform_5(%arg0: i32) -> (i32, i32) {
    %c0_i32 = arith.constant 0 : i32
    %c0_i32_0 = arith.constant 0 : i32
    %c0_i32_1 = arith.constant 0 : i32
    return %c0_i32, %c0_i32_0 : i32, i32
  }
  func.func @transform_6(%arg0: i32) -> (i32, i32) {
    %c0_i32 = arith.constant 0 : i32
    %c0_i32_0 = arith.constant 0 : i32
    %c0_i32_1 = arith.constant 0 : i32
    return %c0_i32, %c0_i32_0 : i32, i32
  }
  func.func @transform_7(%arg0: i32) -> (i32, i32) {
    %c0_i32 = arith.constant 0 : i32
    %c0_i32_0 = arith.constant 0 : i32
    %c0_i32_1 = arith.constant 0 : i32
    return %c0_i32, %c0_i32_0 : i32, i32
  }
  func.func @transform_8(%arg0: i32) -> (i32, i32) {
    %c0_i32 = arith.constant 0 : i32
    %c0_i32_0 = arith.constant 0 : i32
    %c0_i32_1 = arith.constant 0 : i32
    return %c0_i32, %c0_i32_0 : i32, i32
  }
  func.func @transform_9(%arg0: i32) -> (i32, i32) {
    %c0_i32 = arith.constant 0 : i32
    %c0_i32_0 = arith.constant 0 : i32
    return %arg0, %c0_i32 : i32, i32
  }
}

</mosaic_0001>

<llo_original>
// kernel: homogeneous_edge_prediction_classifier.1
$region0: #{homogeneous_edge_prediction_classifier.1}
  #allocation0 [shape = 'u32[]', space=smem, size = 0x4, offset = 0x4, fixed_abs, tag = 'smem constant byte address 0x4 - core index']
  #allocation1 [shape = 'u32[144,128]{1,0:T(1,128)}', space=vmem, size = 0x12000, scoped, tag = 'internal scratch']
  %s0 = inlined_call_operand.vmem [shape: bf16[256,16], index: 0, kind: input, shape index: {}]
  %s1 = inlined_call_operand.vmem [shape: bf16[256,16], index: 1, kind: input, shape index: {}]
  %s2 = inlined_call_operand.vmem [shape: bf16[16,64], index: 2, kind: input, shape index: {}]
  %s3 = inlined_call_operand.vmem [shape: bf16[16,64], index: 3, kind: input, shape index: {}]
  %s4 = inlined_call_operand.vmem [shape: f32[1,64], index: 4, kind: input, shape index: {}]
  %s5 = inlined_call_operand.vmem [shape: bf16[64,32], index: 5, kind: input, shape index: {}]
  %s6 = inlined_call_operand.vmem [shape: f32[1,32], index: 6, kind: input, shape index: {}]
  %s7 = inlined_call_operand.vmem [shape: bf16[32,128], index: 7, kind: input, shape index: {}]
  %s8 = inlined_call_operand.vmem [shape: f32[1,128], index: 8, kind: input, shape index: {}]
  %s9 = inlined_call_operand.vmem [shape: f32[256,128], index: 9, kind: output, shape index: {}]
  %s10 = sld [smem:[#allocation0]]
  $region46: #{homogeneous_edge_prediction_classifier.1} parent=0
    _
  %s12 = ssub.s32 1, %s10
  %s13 = scalar_select 0, %s12, %s10
  // Predicated region
  $region2: #{homogeneous_edge_prediction_classifier.1} parent=0 // pred_check
    _
  $region3: #{homogeneous_edge_prediction_classifier.1} parent=0 // pred_check_branch
    %15 = sbr.rel (0) target = $region5
  $region4: #{homogeneous_edge_prediction_classifier.1} parent=0 // pred_region
    _
  $region5: #{homogeneous_edge_prediction_classifier.1} parent=0 // pred_fallthru
    _
  // Predicated region
  $region6: #{homogeneous_edge_prediction_classifier.1} parent=0 // pred_check
    _
  $region7: #{homogeneous_edge_prediction_classifier.1} parent=0 // pred_check_branch
    %17 = sbr.rel (0) target = $region9
  $region8: #{homogeneous_edge_prediction_classifier.1} parent=0 // pred_region
    _
  $region9: #{homogeneous_edge_prediction_classifier.1} parent=0 // pred_fallthru
    _
  // Predicated region
  $region10: #{homogeneous_edge_prediction_classifier.1} parent=0 // pred_check
    _
  $region11: #{homogeneous_edge_prediction_classifier.1} parent=0 // pred_check_branch
    %19 = sbr.rel (0) target = $region13
  $region12: #{homogeneous_edge_prediction_classifier.1} parent=0 // pred_region
    _
  $region13: #{homogeneous_edge_prediction_classifier.1} parent=0 // pred_fallthru
    _
  // Predicated region
  $region14: #{homogeneous_edge_prediction_classifier.1} parent=0 // pred_check
    _
  $region15: #{homogeneous_edge_prediction_classifier.1} parent=0 // pred_check_branch
    %21 = sbr.rel (0) target = $region17
  $region16: #{homogeneous_edge_prediction_classifier.1} parent=0 // pred_region
    _
  $region17: #{homogeneous_edge_prediction_classifier.1} parent=0 // pred_fallthru
    _
  // Predicated region
  $region18: #{homogeneous_edge_prediction_classifier.1} parent=0 // pred_check
    _
  $region19: #{homogeneous_edge_prediction_classifier.1} parent=0 // pred_check_branch
    %23 = sbr.rel (0) target = $region21
  $region20: #{homogeneous_edge_prediction_classifier.1} parent=0 // pred_region
    _
  $region21: #{homogeneous_edge_prediction_classifier.1} parent=0 // pred_fallthru
    _
  // Predicated region
  $region22: #{homogeneous_edge_prediction_classifier.1} parent=0 // pred_check
    _
  $region23: #{homogeneous_edge_prediction_classifier.1} parent=0 // pred_check_branch
    %25 = sbr.rel (0) target = $region25
  $region24: #{homogeneous_edge_prediction_classifier.1} parent=0 // pred_region
    _
  $region25: #{homogeneous_edge_prediction_classifier.1} parent=0 // pred_fallthru
    _
  // Predicated region
  $region26: #{homogeneous_edge_prediction_classifier.1} parent=0 // pred_check
    _
  $region27: #{homogeneous_edge_prediction_classifier.1} parent=0 // pred_check_branch
    %27 = sbr.rel (0) target = $region29
  $region28: #{homogeneous_edge_prediction_classifier.1} parent=0 // pred_region
    _
  $region29: #{homogeneous_edge_prediction_classifier.1} parent=0 // pred_fallthru
    _
  // Predicated region
  $region30: #{homogeneous_edge_prediction_classifier.1} parent=0 // pred_check
    _
  $region31: #{homogeneous_edge_prediction_classifier.1} parent=0 // pred_check_branch
    %29 = sbr.rel (0) target = $region33
  $region32: #{homogeneous_edge_prediction_classifier.1} parent=0 // pred_region
    _
  $region33: #{homogeneous_edge_prediction_classifier.1} parent=0 // pred_fallthru
    _
  // Predicated region
  $region34: #{homogeneous_edge_prediction_classifier.1} parent=0 // pred_check
    _
  $region35: #{homogeneous_edge_prediction_classifier.1} parent=0 // pred_check_branch
    %31 = sbr.rel (0) target = $region37
  $region36: #{homogeneous_edge_prediction_classifier.1} parent=0 // pred_region
    _
  $region37: #{homogeneous_edge_prediction_classifier.1} parent=0 // pred_fallthru
    _
  %v33 = vld [vmem:[%s4] sm:$0x1]
  %v34 = vld [vmem:[%s6] sm:$0x1]
  %v35 = vld [vmem:[%s8] sm:$0x1]
  %v36 = vld [vmem:[%s0] sm:$0xf]
  %v37 = vld [vmem:[%s0 + $0x4] sm:$0xf]
  %v38 = vld [vmem:[%s0 + $0x8] sm:$0xf]
  %v39 = vld [vmem:[%s0 + $0xc] sm:$0xf]
  %v40 = vld [vmem:[%s0 + $0x10] sm:$0xf]
  %v41 = vld [vmem:[%s0 + $0x14] sm:$0xf]
  %v42 = vld [vmem:[%s0 + $0x18] sm:$0xf]
  %v43 = vld [vmem:[%s0 + $0x1c] sm:$0xf]
  %v44 = vld [vmem:[%s0 + $0x20] sm:$0xf]
  %v45 = vld [vmem:[%s0 + $0x24] sm:$0xf]
  %v46 = vld [vmem:[%s0 + $0x28] sm:$0xf]
  %v47 = vld [vmem:[%s0 + $0x2c] sm:$0xf]
  %v48 = vld [vmem:[%s0 + $0x30] sm:$0xf]
  %v49 = vld [vmem:[%s0 + $0x34] sm:$0xf]
  %v50 = vld [vmem:[%s0 + $0x38] sm:$0xf]
  %v51 = vld [vmem:[%s0 + $0x3c] sm:$0xf]
  %v52 = vld [vmem:[%s0 + $0x40] sm:$0xf]
  %v53 = vld [vmem:[%s0 + $0x44] sm:$0xf]
  %v54 = vld [vmem:[%s0 + $0x48] sm:$0xf]
  %v55 = vld [vmem:[%s0 + $0x4c] sm:$0xf]
  %v56 = vld [vmem:[%s0 + $0x50] sm:$0xf]
  %v57 = vld [vmem:[%s0 + $0x54] sm:$0xf]
  %v58 = vld [vmem:[%s0 + $0x58] sm:$0xf]
  %v59 = vld [vmem:[%s0 + $0x5c] sm:$0xf]
  %v60 = vld [vmem:[%s0 + $0x60] sm:$0xf]
  %v61 = vld [vmem:[%s0 + $0x64] sm:$0xf]
  %v62 = vld [vmem:[%s0 + $0x68] sm:$0xf]
  %v63 = vld [vmem:[%s0 + $0x6c] sm:$0xf]
  %v64 = vld [vmem:[%s0 + $0x70] sm:$0xf]
  %v65 = vld [vmem:[%s0 + $0x74] sm:$0xf]
  %v66 = vld [vmem:[%s0 + $0x78] sm:$0xf]
  %v67 = vld [vmem:[%s0 + $0x7c] sm:$0xf]
  %v68 = vld [vmem:[%s2] sm:$0xf]
  %v69 = vld [vmem:[%s2 + $0x4] sm:$0xf]
  %v70 = vld [vmem:[%s1] sm:$0xf]
  %v71 = vld [vmem:[%s1 + $0x4] sm:$0xf]
  %v72 = vld [vmem:[%s1 + $0x8] sm:$0xf]
  %v73 = vld [vmem:[%s1 + $0xc] sm:$0xf]
  %v74 = vld [vmem:[%s1 + $0x10] sm:$0xf]
  %v75 = vld [vmem:[%s1 + $0x14] sm:$0xf]
  %v76 = vld [vmem:[%s1 + $0x18] sm:$0xf]
  %v77 = vld [vmem:[%s1 + $0x1c] sm:$0xf]
  %v78 = vld [vmem:[%s1 + $0x20] sm:$0xf]
  %v79 = vld [vmem:[%s1 + $0x24] sm:$0xf]
  %v80 = vld [vmem:[%s1 + $0x28] sm:$0xf]
  %v81 = vld [vmem:[%s1 + $0x2c] sm:$0xf]
  %v82 = vld [vmem:[%s1 + $0x30] sm:$0xf]
  %v83 = vld [vmem:[%s1 + $0x34] sm:$0xf]
  %v84 = vld [vmem:[%s1 + $0x38] sm:$0xf]
  %v85 = vld [vmem:[%s1 + $0x3c] sm:$0xf]
  %v86 = vld [vmem:[%s1 + $0x40] sm:$0xf]
  %v87 = vld [vmem:[%s1 + $0x44] sm:$0xf]
  %v88 = vld [vmem:[%s1 + $0x48] sm:$0xf]
  %v89 = vld [vmem:[%s1 + $0x4c] sm:$0xf]
  %v90 = vld [vmem:[%s1 + $0x50] sm:$0xf]
  %v91 = vld [vmem:[%s1 + $0x54] sm:$0xf]
  %v92 = vld [vmem:[%s1 + $0x58] sm:$0xf]
  %v93 = vld [vmem:[%s1 + $0x5c] sm:$0xf]
  %v94 = vld [vmem:[%s1 + $0x60] sm:$0xf]
  %v95 = vld [vmem:[%s1 + $0x64] sm:$0xf]
  %v96 = vld [vmem:[%s1 + $0x68] sm:$0xf]
  %v97 = vld [vmem:[%s1 + $0x6c] sm:$0xf]
  %v98 = vld [vmem:[%s1 + $0x70] sm:$0xf]
  %v99 = vld [vmem:[%s1 + $0x74] sm:$0xf]
  %v100 = vld [vmem:[%s1 + $0x78] sm:$0xf]
  %v101 = vld [vmem:[%s1 + $0x7c] sm:$0xf]
  %v102 = vld [vmem:[%s3] sm:$0xf]
  %v103 = vld [vmem:[%s3 + $0x4] sm:$0xf]
  %v136 = vunpack.c.l.b16 %v70
  %v137 = vunpack.c.l.b16 %v71
  %v138 = vunpack.c.l.b16 %v72
  %v139 = vunpack.c.l.b16 %v73
  %v140 = vunpack.c.l.b16 %v74
  %v141 = vunpack.c.l.b16 %v75
  %v142 = vunpack.c.l.b16 %v76
  %v143 = vunpack.c.l.b16 %v77
  %v144 = vunpack.c.l.b16 %v78
  %v145 = vunpack.c.l.b16 %v79
  %v146 = vunpack.c.l.b16 %v80
  %v147 = vunpack.c.l.b16 %v81
  %v148 = vunpack.c.l.b16 %v82
  %v149 = vunpack.c.l.b16 %v83
  %v150 = vunpack.c.l.b16 %v84
  %v151 = vunpack.c.l.b16 %v85
  %v152 = vunpack.c.l.b16 %v86
  %v153 = vunpack.c.l.b16 %v87
  %v154 = vunpack.c.l.b16 %v88
  %v155 = vunpack.c.l.b16 %v89
  %v156 = vunpack.c.l.b16 %v90
  %v157 = vunpack.c.l.b16 %v91
  %v158 = vunpack.c.l.b16 %v92
  %v159 = vunpack.c.l.b16 %v93
  %v160 = vunpack.c.l.b16 %v94
  %v161 = vunpack.c.l.b16 %v95
  %v162 = vunpack.c.l.b16 %v96
  %v163 = vunpack.c.l.b16 %v97
  %v164 = vunpack.c.l.b16 %v98
  %v165 = vunpack.c.l.b16 %v99
  %v166 = vunpack.c.l.b16 %v100
  %v167 = vunpack.c.l.b16 %v101
  %v168 = vpack.c.b16 %v137, %v136
  %v169 = vpack.c.b16 %v139, %v138
  %v170 = vpack.c.b16 %v141, %v140
  %v171 = vpack.c.b16 %v143, %v142
  %v172 = vpack.c.b16 %v145, %v144
  %v173 = vpack.c.b16 %v147, %v146
  %v174 = vpack.c.b16 %v149, %v148
  %v175 = vpack.c.b16 %v151, %v150
  %v176 = vpack.c.b16 %v153, %v152
  %v177 = vpack.c.b16 %v155, %v154
  %v178 = vpack.c.b16 %v157, %v156
  %v179 = vpack.c.b16 %v159, %v158
  %v180 = vpack.c.b16 %v161, %v160
  %v181 = vpack.c.b16 %v163, %v162
  %v182 = vpack.c.b16 %v165, %v164
  %v183 = vpack.c.b16 %v167, %v166
  %v186 = vunpack.c.l.b16 %v102
  %v187 = vunpack.c.l.b16 %v103
  %v188 = vpack.c.b16 %v187, %v186
  %vm190 = vcmask 130048
  %v192 = vsel %vm190, %v168, 0
  %v195 = vsel %vm190, %v169, 0
  %v198 = vsel %vm190, %v170, 0
  %v201 = vsel %vm190, %v171, 0
  %v204 = vsel %vm190, %v172, 0
  %v207 = vsel %vm190, %v173, 0
  %v210 = vsel %vm190, %v174, 0
  %v213 = vsel %vm190, %v175, 0
  %v216 = vsel %vm190, %v176, 0
  %v219 = vsel %vm190, %v177, 0
  %v222 = vsel %vm190, %v178, 0
  %v225 = vsel %vm190, %v179, 0
  %v228 = vsel %vm190, %v180, 0
  %v231 = vsel %vm190, %v181, 0
  %v234 = vsel %vm190, %v182, 0
  %v237 = vsel %vm190, %v183, 0
  %239 = vmatprep.subr.bf16.mxu0 0
  %240 = vmatpush1.bf16.msra.mxu0 0
  %241 = vmatprep.subr.bf16.mxu0 0
  %242 = vmatpush1.bf16.msra.mxu0 0
  %243 = vmatprep.subr.bf16.mxu0 0
  %244 = vmatpush1.bf16.msra.mxu0 0
  %245 = vmatprep.subr.bf16.mxu0 0
  %246 = vmatpush1.bf16.msra.mxu0 0
  %247 = vmatprep.subr.bf16.mxu0 0
  %248 = vmatpush1.bf16.msra.mxu0 0
  %249 = vmatprep.subr.bf16.mxu0 0
  %250 = vmatpush1.bf16.msra.mxu0 0
  %251 = vmatprep.subr.bf16.mxu0 0
  %252 = vmatpush1.bf16.msra.mxu0 0
  %253 = vmatprep.subr.bf16.mxu0 0
  %254 = vmatpush1.bf16.msra.mxu0 %v188
  %255 = vmatprep.subr.bf16.mxu0 0
  %256 = vmatpush2.bf16.msra.mxu0 0
  %257 = vmatprep.subr.bf16.mxu0 0
  %258 = vmatpush2.bf16.msra.mxu0 0
  %259 = vmatprep.subr.bf16.mxu0 0
  %260 = vmatpush2.bf16.msra.mxu0 0
  %261 = vmatprep.subr.bf16.mxu0 0
  %262 = vmatpush2.bf16.msra.mxu0 0
  %263 = vmatprep.subr.bf16.mxu0 0
  %264 = vmatpush2.bf16.msra.mxu0 0
  %265 = vmatprep.subr.bf16.mxu0 0
  %266 = vmatpush2.bf16.msra.mxu0 0
  %267 = vmatprep.subr.bf16.mxu0 0
  %268 = vmatpush2.bf16.msra.mxu0 0
  %269 = vmatprep.subr.bf16.mxu0 0
  %270 = vmatpush2.bf16.msra.mxu0 0
  %271 = vmatprep.mubr.bf16.mxu0 0
  %272 = vmatmul.mubr.bf16.gmra.mxu0 %v192
  %v273 = vpop.f32.mrf.mxu0
  %v274 = vadd.f32 0.0, %v273
  %v275 = vpop.f32.mrf.mxu0
  %v276 = vpop.f32.mrf.mxu0
  %v277 = vadd.f32 0.0, %v276
  %v278 = vpop.f32.mrf.mxu0
  %279 = vmatprep.mubr.bf16.mxu0 0
  %280 = vmatmul.mubr.bf16.gmra.mxu0 %v195
  %v281 = vpop.f32.mrf.mxu0
  %v282 = vadd.f32 0.0, %v281
  %v283 = vpop.f32.mrf.mxu0
  %v284 = vpop.f32.mrf.mxu0
  %v285 = vadd.f32 0.0, %v284
  %v286 = vpop.f32.mrf.mxu0
  %287 = vmatprep.mubr.bf16.mxu0 0
  %288 = vmatmul.mubr.bf16.gmra.mxu0 %v198
  %v289 = vpop.f32.mrf.mxu0
  %v290 = vadd.f32 0.0, %v289
  %v291 = vpop.f32.mrf.mxu0
  %v292 = vpop.f32.mrf.mxu0
  %v293 = vadd.f32 0.0, %v292
  %v294 = vpop.f32.mrf.mxu0
  %295 = vmatprep.mubr.bf16.mxu0 0
  %296 = vmatmul.mubr.bf16.gmra.mxu0 %v201
  %v297 = vpop.f32.mrf.mxu0
  %v298 = vadd.f32 0.0, %v297
  %v299 = vpop.f32.mrf.mxu0
  %v300 = vpop.f32.mrf.mxu0
  %v301 = vadd.f32 0.0, %v300
  %v302 = vpop.f32.mrf.mxu0
  %303 = vmatprep.mubr.bf16.mxu0 0
  %304 = vmatmul.mubr.bf16.gmra.mxu0 %v204
  %v305 = vpop.f32.mrf.mxu0
  %v306 = vadd.f32 0.0, %v305
  %v307 = vpop.f32.mrf.mxu0
  %v308 = vpop.f32.mrf.mxu0
  %v309 = vadd.f32 0.0, %v308
  %v310 = vpop.f32.mrf.mxu0
  %311 = vmatprep.mubr.bf16.mxu0 0
  %312 = vmatmul.mubr.bf16.gmra.mxu0 %v207
  %v313 = vpop.f32.mrf.mxu0
  %v314 = vadd.f32 0.0, %v313
  %v315 = vpop.f32.mrf.mxu0
  %v316 = vpop.f32.mrf.mxu0
  %v317 = vadd.f32 0.0, %v316
  %v318 = vpop.f32.mrf.mxu0
  %319 = vmatprep.mubr.bf16.mxu0 0
  %320 = vmatmul.mubr.bf16.gmra.mxu0 %v210
  %v321 = vpop.f32.mrf.mxu0
  %v322 = vadd.f32 0.0, %v321
  %v323 = vpop.f32.mrf.mxu0
  %v324 = vpop.f32.mrf.mxu0
  %v325 = vadd.f32 0.0, %v324
  %v326 = vpop.f32.mrf.mxu0
  %327 = vmatprep.mubr.bf16.mxu0 0
  %328 = vmatmul.mubr.bf16.gmra.mxu0 %v213
  %v329 = vpop.f32.mrf.mxu0
  %v330 = vadd.f32 0.0, %v329
  %v331 = vpop.f32.mrf.mxu0
  %v332 = vpop.f32.mrf.mxu0
  %v333 = vadd.f32 0.0, %v332
  %v334 = vpop.f32.mrf.mxu0
  %335 = vmatprep.mubr.bf16.mxu0 0
  %336 = vmatmul.mubr.bf16.gmra.mxu0 %v216
  %v337 = vpop.f32.mrf.mxu0
  %v338 = vadd.f32 0.0, %v337
  %v339 = vpop.f32.mrf.mxu0
  %v340 = vpop.f32.mrf.mxu0
  %v341 = vadd.f32 0.0, %v340
  %v342 = vpop.f32.mrf.mxu0
  %343 = vmatprep.mubr.bf16.mxu0 0
  %344 = vmatmul.mubr.bf16.gmra.mxu0 %v219
  %v345 = vpop.f32.mrf.mxu0
  %v346 = vadd.f32 0.0, %v345
  %v347 = vpop.f32.mrf.mxu0
  %v348 = vpop.f32.mrf.mxu0
  %v349 = vadd.f32 0.0, %v348
  %v350 = vpop.f32.mrf.mxu0
  %351 = vmatprep.mubr.bf16.mxu0 0
  %352 = vmatmul.mubr.bf16.gmra.mxu0 %v222
  %v353 = vpop.f32.mrf.mxu0
  %v354 = vadd.f32 0.0, %v353
  %v355 = vpop.f32.mrf.mxu0
  %v356 = vpop.f32.mrf.mxu0
  %v357 = vadd.f32 0.0, %v356
  %v358 = vpop.f32.mrf.mxu0
  %359 = vmatprep.mubr.bf16.mxu0 0
  %360 = vmatmul.mubr.bf16.gmra.mxu0 %v225
  %v361 = vpop.f32.mrf.mxu0
  %v362 = vadd.f32 0.0, %v361
  %v363 = vpop.f32.mrf.mxu0
  %v364 = vpop.f32.mrf.mxu0
  %v365 = vadd.f32 0.0, %v364
  %v366 = vpop.f32.mrf.mxu0
  %367 = vmatprep.mubr.bf16.mxu0 0
  %368 = vmatmul.mubr.bf16.gmra.mxu0 %v228
  %v369 = vpop.f32.mrf.mxu0
  %v370 = vadd.f32 0.0, %v369
  %v371 = vpop.f32.mrf.mxu0
  %v372 = vpop.f32.mrf.mxu0
  %v373 = vadd.f32 0.0, %v372
  %v374 = vpop.f32.mrf.mxu0
  %375 = vmatprep.mubr.bf16.mxu0 0
  %376 = vmatmul.mubr.bf16.gmra.mxu0 %v231
  %v377 = vpop.f32.mrf.mxu0
  %v378 = vadd.f32 0.0, %v377
  %v379 = vpop.f32.mrf.mxu0
  %v380 = vpop.f32.mrf.mxu0
  %v381 = vadd.f32 0.0, %v380
  %v382 = vpop.f32.mrf.mxu0
  %383 = vmatprep.mubr.bf16.mxu0 0
  %384 = vmatmul.mubr.bf16.gmra.mxu0 %v234
  %v385 = vpop.f32.mrf.mxu0
  %v386 = vadd.f32 0.0, %v385
  %v387 = vpop.f32.mrf.mxu0
  %v388 = vpop.f32.mrf.mxu0
  %v389 = vadd.f32 0.0, %v388
  %v390 = vpop.f32.mrf.mxu0
  %391 = vmatprep.mubr.bf16.mxu0 0
  %392 = vmatmul.mubr.bf16.gmra.mxu0 %v237
  %v393 = vpop.f32.mrf.mxu0
  %v394 = vadd.f32 0.0, %v393
  %v395 = vpop.f32.mrf.mxu0
  %v396 = vpop.f32.mrf.mxu0
  %v397 = vadd.f32 0.0, %v396
  %v398 = vpop.f32.mrf.mxu0
  %399 = vdwg.mxu0
  %v432 = vunpack.c.l.b16 %v36
  %v433 = vunpack.c.l.b16 %v37
  %v434 = vunpack.c.l.b16 %v38
  %v435 = vunpack.c.l.b16 %v39
  %v436 = vunpack.c.l.b16 %v40
  %v437 = vunpack.c.l.b16 %v41
  %v438 = vunpack.c.l.b16 %v42
  %v439 = vunpack.c.l.b16 %v43
  %v440 = vunpack.c.l.b16 %v44
  %v441 = vunpack.c.l.b16 %v45
  %v442 = vunpack.c.l.b16 %v46
  %v443 = vunpack.c.l.b16 %v47
  %v444 = vunpack.c.l.b16 %v48
  %v445 = vunpack.c.l.b16 %v49
  %v446 = vunpack.c.l.b16 %v50
  %v447 = vunpack.c.l.b16 %v51
  %v448 = vunpack.c.l.b16 %v52
  %v449 = vunpack.c.l.b16 %v53
  %v450 = vunpack.c.l.b16 %v54
  %v451 = vunpack.c.l.b16 %v55
  %v452 = vunpack.c.l.b16 %v56
  %v453 = vunpack.c.l.b16 %v57
  %v454 = vunpack.c.l.b16 %v58
  %v455 = vunpack.c.l.b16 %v59
  %v456 = vunpack.c.l.b16 %v60
  %v457 = vunpack.c.l.b16 %v61
  %v458 = vunpack.c.l.b16 %v62
  %v459 = vunpack.c.l.b16 %v63
  %v460 = vunpack.c.l.b16 %v64
  %v461 = vunpack.c.l.b16 %v65
  %v462 = vunpack.c.l.b16 %v66
  %v463 = vunpack.c.l.b16 %v67
  %v464 = vpack.c.b16 %v433, %v432
  %v465 = vpack.c.b16 %v435, %v434
  %v466 = vpack.c.b16 %v437, %v436
  %v467 = vpack.c.b16 %v439, %v438
  %v468 = vpack.c.b16 %v441, %v440
  %v469 = vpack.c.b16 %v443, %v442
  %v470 = vpack.c.b16 %v445, %v444
  %v471 = vpack.c.b16 %v447, %v446
  %v472 = vpack.c.b16 %v449, %v448
  %v473 = vpack.c.b16 %v451, %v450
  %v474 = vpack.c.b16 %v453, %v452
  %v475 = vpack.c.b16 %v455, %v454
  %v476 = vpack.c.b16 %v457, %v456
  %v477 = vpack.c.b16 %v459, %v458
  %v478 = vpack.c.b16 %v461, %v460
  %v479 = vpack.c.b16 %v463, %v462
  %v482 = vunpack.c.l.b16 %v68
  %v483 = vunpack.c.l.b16 %v69
  %v484 = vpack.c.b16 %v483, %v482
  %v487 = vsel %vm190, %v464, 0
  %v490 = vsel %vm190, %v465, 0
  %v493 = vsel %vm190, %v466, 0
  %v496 = vsel %vm190, %v467, 0
  %v499 = vsel %vm190, %v468, 0
  %v502 = vsel %vm190, %v469, 0
  %v505 = vsel %vm190, %v470, 0
  %v508 = vsel %vm190, %v471, 0
  %v511 = vsel %vm190, %v472, 0
  %v514 = vsel %vm190, %v473, 0
  %v517 = vsel %vm190, %v474, 0
  %v520 = vsel %vm190, %v475, 0
  %v523 = vsel %vm190, %v476, 0
  %v526 = vsel %vm190, %v477, 0
  %v529 = vsel %vm190, %v478, 0
  %v532 = vsel %vm190, %v479, 0
  %534 = vmatprep.subr.bf16.mxu0 0
  %535 = vmatpush1.bf16.msra.mxu0 0
  %536 = vmatprep.subr.bf16.mxu0 0
  %537 = vmatpush1.bf16.msra.mxu0 0
  %538 = vmatprep.subr.bf16.mxu0 0
  %539 = vmatpush1.bf16.msra.mxu0 0
  %540 = vmatprep.subr.bf16.mxu0 0
  %541 = vmatpush1.bf16.msra.mxu0 0
  %542 = vmatprep.subr.bf16.mxu0 0
  %543 = vmatpush1.bf16.msra.mxu0 0
  %544 = vmatprep.subr.bf16.mxu0 0
  %545 = vmatpush1.bf16.msra.mxu0 0
  %546 = vmatprep.subr.bf16.mxu0 0
  %547 = vmatpush1.bf16.msra.mxu0 0
  %548 = vmatprep.subr.bf16.mxu0 0
  %549 = vmatpush1.bf16.msra.mxu0 %v484
  %550 = vmatprep.subr.bf16.mxu0 0
  %551 = vmatpush2.bf16.msra.mxu0 0
  %552 = vmatprep.subr.bf16.mxu0 0
  %553 = vmatpush2.bf16.msra.mxu0 0
  %554 = vmatprep.subr.bf16.mxu0 0
  %555 = vmatpush2.bf16.msra.mxu0 0
  %556 = vmatprep.subr.bf16.mxu0 0
  %557 = vmatpush2.bf16.msra.mxu0 0
  %558 = vmatprep.subr.bf16.mxu0 0
  %559 = vmatpush2.bf16.msra.mxu0 0
  %560 = vmatprep.subr.bf16.mxu0 0
  %561 = vmatpush2.bf16.msra.mxu0 0
  %562 = vmatprep.subr.bf16.mxu0 0
  %563 = vmatpush2.bf16.msra.mxu0 0
  %564 = vmatprep.subr.bf16.mxu0 0
  %565 = vmatpush2.bf16.msra.mxu0 0
  %566 = vmatprep.mubr.bf16.mxu0 0
  %567 = vmatmul.mubr.bf16.gmra.mxu0 %v487
  %v568 = vpop.f32.mrf.mxu0
  %v569 = vadd.f32 %v274, %v568
  %v570 = vpop.f32.mrf.mxu0
  %v571 = vpop.f32.mrf.mxu0
  %v572 = vadd.f32 %v277, %v571
  %v573 = vpop.f32.mrf.mxu0
  %574 = vmatprep.mubr.bf16.mxu0 0
  %575 = vmatmul.mubr.bf16.gmra.mxu0 %v490
  %v576 = vpop.f32.mrf.mxu0
  %v577 = vadd.f32 %v282, %v576
  %v578 = vpop.f32.mrf.mxu0
  %v579 = vpop.f32.mrf.mxu0
  %v580 = vadd.f32 %v285, %v579
  %v581 = vpop.f32.mrf.mxu0
  %582 = vmatprep.mubr.bf16.mxu0 0
  %583 = vmatmul.mubr.bf16.gmra.mxu0 %v493
  %v584 = vpop.f32.mrf.mxu0
  %v585 = vadd.f32 %v290, %v584
  %v586 = vpop.f32.mrf.mxu0
  %v587 = vpop.f32.mrf.mxu0
  %v588 = vadd.f32 %v293, %v587
  %v589 = vpop.f32.mrf.mxu0
  %590 = vmatprep.mubr.bf16.mxu0 0
  %591 = vmatmul.mubr.bf16.gmra.mxu0 %v496
  %v592 = vpop.f32.mrf.mxu0
  %v593 = vadd.f32 %v298, %v592
  %v594 = vpop.f32.mrf.mxu0
  %v595 = vpop.f32.mrf.mxu0
  %v596 = vadd.f32 %v301, %v595
  %v597 = vpop.f32.mrf.mxu0
  %598 = vmatprep.mubr.bf16.mxu0 0
  %599 = vmatmul.mubr.bf16.gmra.mxu0 %v499
  %v600 = vpop.f32.mrf.mxu0
  %v601 = vadd.f32 %v306, %v600
  %v602 = vpop.f32.mrf.mxu0
  %v603 = vpop.f32.mrf.mxu0
  %v604 = vadd.f32 %v309, %v603
  %v605 = vpop.f32.mrf.mxu0
  %606 = vmatprep.mubr.bf16.mxu0 0
  %607 = vmatmul.mubr.bf16.gmra.mxu0 %v502
  %v608 = vpop.f32.mrf.mxu0
  %v609 = vadd.f32 %v314, %v608
  %v610 = vpop.f32.mrf.mxu0
  %v611 = vpop.f32.mrf.mxu0
  %v612 = vadd.f32 %v317, %v611
  %v613 = vpop.f32.mrf.mxu0
  %614 = vmatprep.mubr.bf16.mxu0 0
  %615 = vmatmul.mubr.bf16.gmra.mxu0 %v505
  %v616 = vpop.f32.mrf.mxu0
  %v617 = vadd.f32 %v322, %v616
  %v618 = vpop.f32.mrf.mxu0
  %v619 = vpop.f32.mrf.mxu0
  %v620 = vadd.f32 %v325, %v619
  %v621 = vpop.f32.mrf.mxu0
  %622 = vmatprep.mubr.bf16.mxu0 0
  %623 = vmatmul.mubr.bf16.gmra.mxu0 %v508
  %v624 = vpop.f32.mrf.mxu0
  %v625 = vadd.f32 %v330, %v624
  %v626 = vpop.f32.mrf.mxu0
  %v627 = vpop.f32.mrf.mxu0
  %v628 = vadd.f32 %v333, %v627
  %v629 = vpop.f32.mrf.mxu0
  %630 = vmatprep.mubr.bf16.mxu0 0
  %631 = vmatmul.mubr.bf16.gmra.mxu0 %v511
  %v632 = vpop.f32.mrf.mxu0
  %v633 = vadd.f32 %v338, %v632
  %v634 = vpop.f32.mrf.mxu0
  %v635 = vpop.f32.mrf.mxu0
  %v636 = vadd.f32 %v341, %v635
  %v637 = vpop.f32.mrf.mxu0
  %638 = vmatprep.mubr.bf16.mxu0 0
  %639 = vmatmul.mubr.bf16.gmra.mxu0 %v514
  %v640 = vpop.f32.mrf.mxu0
  %v641 = vadd.f32 %v346, %v640
  %v642 = vpop.f32.mrf.mxu0
  %v643 = vpop.f32.mrf.mxu0
  %v644 = vadd.f32 %v349, %v643
  %v645 = vpop.f32.mrf.mxu0
  %646 = vmatprep.mubr.bf16.mxu0 0
  %647 = vmatmul.mubr.bf16.gmra.mxu0 %v517
  %v648 = vpop.f32.mrf.mxu0
  %v649 = vadd.f32 %v354, %v648
  %v650 = vpop.f32.mrf.mxu0
  %v651 = vpop.f32.mrf.mxu0
  %v652 = vadd.f32 %v357, %v651
  %v653 = vpop.f32.mrf.mxu0
  %654 = vmatprep.mubr.bf16.mxu0 0
  %655 = vmatmul.mubr.bf16.gmra.mxu0 %v520
  %v656 = vpop.f32.mrf.mxu0
  %v657 = vadd.f32 %v362, %v656
  %v658 = vpop.f32.mrf.mxu0
  %v659 = vpop.f32.mrf.mxu0
  %v660 = vadd.f32 %v365, %v659
  %v661 = vpop.f32.mrf.mxu0
  %662 = vmatprep.mubr.bf16.mxu0 0
  %663 = vmatmul.mubr.bf16.gmra.mxu0 %v523
  %v664 = vpop.f32.mrf.mxu0
  %v665 = vadd.f32 %v370, %v664
  %v666 = vpop.f32.mrf.mxu0
  %v667 = vpop.f32.mrf.mxu0
  %v668 = vadd.f32 %v373, %v667
  %v669 = vpop.f32.mrf.mxu0
  %670 = vmatprep.mubr.bf16.mxu0 0
  %671 = vmatmul.mubr.bf16.gmra.mxu0 %v526
  %v672 = vpop.f32.mrf.mxu0
  %v673 = vadd.f32 %v378, %v672
  %v674 = vpop.f32.mrf.mxu0
  %v675 = vpop.f32.mrf.mxu0
  %v676 = vadd.f32 %v381, %v675
  %v677 = vpop.f32.mrf.mxu0
  %678 = vmatprep.mubr.bf16.mxu0 0
  %679 = vmatmul.mubr.bf16.gmra.mxu0 %v529
  %v680 = vpop.f32.mrf.mxu0
  %v681 = vadd.f32 %v386, %v680
  %v682 = vpop.f32.mrf.mxu0
  %v683 = vpop.f32.mrf.mxu0
  %v684 = vadd.f32 %v389, %v683
  %v685 = vpop.f32.mrf.mxu0
  %686 = vmatprep.mubr.bf16.mxu0 0
  %687 = vmatmul.mubr.bf16.gmra.mxu0 %v532
  %v688 = vpop.f32.mrf.mxu0
  %v689 = vadd.f32 %v394, %v688
  %v690 = vpop.f32.mrf.mxu0
  %v691 = vpop.f32.mrf.mxu0
  %v692 = vadd.f32 %v397, %v691
  %v693 = vpop.f32.mrf.mxu0
  %694 = vdwg.mxu0
  %v696 = vlaneseq
  %v697 = vshrl.u32 %v696, 7
  %v698 = vsub.s32 0, %v697
  %v699 = vrot.slane %v33, %v698
  %v701 = vadd.f32 %v569, %v699
  %v702 = vadd.f32 %v572, %v699
  %v703 = vadd.f32 %v577, %v699
  %v704 = vadd.f32 %v580, %v699
  %v705 = vadd.f32 %v585, %v699
  %v706 = vadd.f32 %v588, %v699
  %v707 = vadd.f32 %v593, %v699
  %v708 = vadd.f32 %v596, %v699
  %v709 = vadd.f32 %v601, %v699
  %v710 = vadd.f32 %v604, %v699
  %v711 = vadd.f32 %v609, %v699
  %v712 = vadd.f32 %v612, %v699
  %v713 = vadd.f32 %v617, %v699
  %v714 = vadd.f32 %v620, %v699
  %v715 = vadd.f32 %v625, %v699
  %v716 = vadd.f32 %v628, %v699
  %v717 = vadd.f32 %v633, %v699
  %v718 = vadd.f32 %v636, %v699
  %v719 = vadd.f32 %v641, %v699
  %v720 = vadd.f32 %v644, %v699
  %v721 = vadd.f32 %v649, %v699
  %v722 = vadd.f32 %v652, %v699
  %v723 = vadd.f32 %v657, %v699
  %v724 = vadd.f32 %v660, %v699
  %v725 = vadd.f32 %v665, %v699
  %v726 = vadd.f32 %v668, %v699
  %v727 = vadd.f32 %v673, %v699
  %v728 = vadd.f32 %v676, %v699
  %v729 = vadd.f32 %v681, %v699
  %v730 = vadd.f32 %v684, %v699
  %v731 = vadd.f32 %v689, %v699
  %v732 = vadd.f32 %v692, %v699
  %v733 = vmax.f32 %v701, 0.0
  %v734 = vmax.f32 %v702, 0.0
  %v735 = vmax.f32 %v703, 0.0
  %v736 = vmax.f32 %v704, 0.0
  %v737 = vmax.f32 %v705, 0.0
  %v738 = vmax.f32 %v706, 0.0
  %v739 = vmax.f32 %v707, 0.0
  %v740 = vmax.f32 %v708, 0.0
  %v741 = vmax.f32 %v709, 0.0
  %v742 = vmax.f32 %v710, 0.0
  %v743 = vmax.f32 %v711, 0.0
  %v744 = vmax.f32 %v712, 0.0
  %v745 = vmax.f32 %v713, 0.0
  %v746 = vmax.f32 %v714, 0.0
  %v747 = vmax.f32 %v715, 0.0
  %v748 = vmax.f32 %v716, 0.0
  %v749 = vmax.f32 %v717, 0.0
  %v750 = vmax.f32 %v718, 0.0
  %v751 = vmax.f32 %v719, 0.0
  %v752 = vmax.f32 %v720, 0.0
  %v753 = vmax.f32 %v721, 0.0
  %v754 = vmax.f32 %v722, 0.0
  %v755 = vmax.f32 %v723, 0.0
  %v756 = vmax.f32 %v724, 0.0
  %v757 = vmax.f32 %v725, 0.0
  %v758 = vmax.f32 %v726, 0.0
  %v759 = vmax.f32 %v727, 0.0
  %v760 = vmax.f32 %v728, 0.0
  %v761 = vmax.f32 %v729, 0.0
  %v762 = vmax.f32 %v730, 0.0
  %v763 = vmax.f32 %v731, 0.0
  %v764 = vmax.f32 %v732, 0.0
  %v765 = vpack.c.bf16 %v734, %v733
  %v766 = vpack.c.bf16 %v736, %v735
  %v767 = vpack.c.bf16 %v738, %v737
  %v768 = vpack.c.bf16 %v740, %v739
  %v769 = vpack.c.bf16 %v742, %v741
  %v770 = vpack.c.bf16 %v744, %v743
  %v771 = vpack.c.bf16 %v746, %v745
  %v772 = vpack.c.bf16 %v748, %v747
  %v773 = vpack.c.bf16 %v750, %v749
  %v774 = vpack.c.bf16 %v752, %v751
  %v775 = vpack.c.bf16 %v754, %v753
  %v776 = vpack.c.bf16 %v756, %v755
  %v777 = vpack.c.bf16 %v758, %v757
  %v778 = vpack.c.bf16 %v760, %v759
  %v779 = vpack.c.bf16 %v762, %v761
  %v780 = vpack.c.bf16 %v764, %v763
  %v781 = vld [vmem:[%s5] sm:$0xf]
  %v782 = vld [vmem:[%s5 + $0x4] sm:$0xf]
  %v783 = vld [vmem:[%s5 + $0x8] sm:$0xf]
  %v784 = vld [vmem:[%s5 + $0xc] sm:$0xf]
  %v785 = vld [vmem:[%s5 + $0x10] sm:$0xf]
  %v786 = vld [vmem:[%s5 + $0x14] sm:$0xf]
  %v787 = vld [vmem:[%s5 + $0x18] sm:$0xf]
  %v788 = vld [vmem:[%s5 + $0x1c] sm:$0xf]
  %v790 = vlaneseq
  %v791 = vshrl.u32 %v790, 7
  %v792 = vsub.s32 0, %v791
  %v793 = vrot.slane %v34, %v792
  %v803 = vunpack.c.l.b16 %v781
  %v804 = vunpack.c.l.b16 %v782
  %v805 = vunpack.c.l.b16 %v783
  %v806 = vunpack.c.l.b16 %v784
  %v807 = vunpack.c.l.b16 %v785
  %v808 = vunpack.c.l.b16 %v786
  %v809 = vunpack.c.l.b16 %v787
  %v810 = vunpack.c.l.b16 %v788
  %v811 = vpack.c.b16 %v804, %v803
  %v812 = vpack.c.b16 %v806, %v805
  %v813 = vpack.c.b16 %v808, %v807
  %v814 = vpack.c.b16 %v810, %v809
  %vm819 = vcmask 523264
  %v821 = vsel %vm819, %v765, 0
  %v824 = vsel %vm819, %v766, 0
  %v827 = vsel %vm819, %v767, 0
  %v830 = vsel %vm819, %v768, 0
  %v833 = vsel %vm819, %v769, 0
  %v836 = vsel %vm819, %v770, 0
  %v839 = vsel %vm819, %v771, 0
  %v842 = vsel %vm819, %v772, 0
  %v845 = vsel %vm819, %v773, 0
  %v848 = vsel %vm819, %v774, 0
  %v851 = vsel %vm819, %v775, 0
  %v854 = vsel %vm819, %v776, 0
  %v857 = vsel %vm819, %v777, 0
  %v860 = vsel %vm819, %v778, 0
  %v863 = vsel %vm819, %v779, 0
  %v866 = vsel %vm819, %v780, 0
  %868 = vmatprep.subr.bf16.mxu0 0
  %869 = vmatpush1.bf16.msra.mxu0 0
  %870 = vmatprep.subr.bf16.mxu0 0
  %871 = vmatpush1.bf16.msra.mxu0 0
  %872 = vmatprep.subr.bf16.mxu0 0
  %873 = vmatpush1.bf16.msra.mxu0 0
  %874 = vmatprep.subr.bf16.mxu0 0
  %875 = vmatpush1.bf16.msra.mxu0 0
  %876 = vmatprep.subr.bf16.mxu0 0
  %877 = vmatpush1.bf16.msra.mxu0 %v814
  %878 = vmatprep.subr.bf16.mxu0 0
  %879 = vmatpush1.bf16.msra.mxu0 %v813
  %880 = vmatprep.subr.bf16.mxu0 0
  %881 = vmatpush1.bf16.msra.mxu0 %v812
  %882 = vmatprep.subr.bf16.mxu0 0
  %883 = vmatpush1.bf16.msra.mxu0 %v811
  %884 = vmatprep.subr.bf16.mxu0 0
  %885 = vmatpush2.bf16.msra.mxu0 0
  %886 = vmatprep.subr.bf16.mxu0 0
  %887 = vmatpush2.bf16.msra.mxu0 0
  %888 = vmatprep.subr.bf16.mxu0 0
  %889 = vmatpush2.bf16.msra.mxu0 0
  %890 = vmatprep.subr.bf16.mxu0 0
  %891 = vmatpush2.bf16.msra.mxu0 0
  %892 = vmatprep.subr.bf16.mxu0 0
  %893 = vmatpush2.bf16.msra.mxu0 0
  %894 = vmatprep.subr.bf16.mxu0 0
  %895 = vmatpush2.bf16.msra.mxu0 0
  %896 = vmatprep.subr.bf16.mxu0 0
  %897 = vmatpush2.bf16.msra.mxu0 0
  %898 = vmatprep.subr.bf16.mxu0 0
  %899 = vmatpush2.bf16.msra.mxu0 0
  %900 = vmatprep.mubr.bf16.mxu0 0
  %901 = vmatmul.mubr.bf16.gmra.mxu0 %v821
  %v902 = vpop.f32.mrf.mxu0
  %v903 = vadd.f32 %v793, %v902
  %v904 = vpop.f32.mrf.mxu0
  %v905 = vpop.f32.mrf.mxu0
  %v906 = vadd.f32 %v793, %v905
  %v907 = vpop.f32.mrf.mxu0
  %908 = vmatprep.mubr.bf16.mxu0 0
  %909 = vmatmul.mubr.bf16.gmra.mxu0 %v824
  %v910 = vpop.f32.mrf.mxu0
  %v911 = vadd.f32 %v793, %v910
  %v912 = vpop.f32.mrf.mxu0
  %v913 = vpop.f32.mrf.mxu0
  %v914 = vadd.f32 %v793, %v913
  %v915 = vpop.f32.mrf.mxu0
  %916 = vmatprep.mubr.bf16.mxu0 0
  %917 = vmatmul.mubr.bf16.gmra.mxu0 %v827
  %v918 = vpop.f32.mrf.mxu0
  %v919 = vadd.f32 %v793, %v918
  %v920 = vpop.f32.mrf.mxu0
  %v921 = vpop.f32.mrf.mxu0
  %v922 = vadd.f32 %v793, %v921
  %v923 = vpop.f32.mrf.mxu0
  %924 = vmatprep.mubr.bf16.mxu0 0
  %925 = vmatmul.mubr.bf16.gmra.mxu0 %v830
  %v926 = vpop.f32.mrf.mxu0
  %v927 = vadd.f32 %v793, %v926
  %v928 = vpop.f32.mrf.mxu0
  %v929 = vpop.f32.mrf.mxu0
  %v930 = vadd.f32 %v793, %v929
  %v931 = vpop.f32.mrf.mxu0
  %932 = vmatprep.mubr.bf16.mxu0 0
  %933 = vmatmul.mubr.bf16.gmra.mxu0 %v833
  %v934 = vpop.f32.mrf.mxu0
  %v935 = vadd.f32 %v793, %v934
  %v936 = vpop.f32.mrf.mxu0
  %v937 = vpop.f32.mrf.mxu0
  %v938 = vadd.f32 %v793, %v937
  %v939 = vpop.f32.mrf.mxu0
  %940 = vmatprep.mubr.bf16.mxu0 0
  %941 = vmatmul.mubr.bf16.gmra.mxu0 %v836
  %v942 = vpop.f32.mrf.mxu0
  %v943 = vadd.f32 %v793, %v942
  %v944 = vpop.f32.mrf.mxu0
  %v945 = vpop.f32.mrf.mxu0
  %v946 = vadd.f32 %v793, %v945
  %v947 = vpop.f32.mrf.mxu0
  %948 = vmatprep.mubr.bf16.mxu0 0
  %949 = vmatmul.mubr.bf16.gmra.mxu0 %v839
  %v950 = vpop.f32.mrf.mxu0
  %v951 = vadd.f32 %v793, %v950
  %v952 = vpop.f32.mrf.mxu0
  %v953 = vpop.f32.mrf.mxu0
  %v954 = vadd.f32 %v793, %v953
  %v955 = vpop.f32.mrf.mxu0
  %956 = vmatprep.mubr.bf16.mxu0 0
  %957 = vmatmul.mubr.bf16.gmra.mxu0 %v842
  %v958 = vpop.f32.mrf.mxu0
  %v959 = vadd.f32 %v793, %v958
  %v960 = vpop.f32.mrf.mxu0
  %v961 = vpop.f32.mrf.mxu0
  %v962 = vadd.f32 %v793, %v961
  %v963 = vpop.f32.mrf.mxu0
  %964 = vmatprep.mubr.bf16.mxu0 0
  %965 = vmatmul.mubr.bf16.gmra.mxu0 %v845
  %v966 = vpop.f32.mrf.mxu0
  %v967 = vadd.f32 %v793, %v966
  %v968 = vpop.f32.mrf.mxu0
  %v969 = vpop.f32.mrf.mxu0
  %v970 = vadd.f32 %v793, %v969
  %v971 = vpop.f32.mrf.mxu0
  %972 = vmatprep.mubr.bf16.mxu0 0
  %973 = vmatmul.mubr.bf16.gmra.mxu0 %v848
  %v974 = vpop.f32.mrf.mxu0
  %v975 = vadd.f32 %v793, %v974
  %v976 = vpop.f32.mrf.mxu0
  %v977 = vpop.f32.mrf.mxu0
  %v978 = vadd.f32 %v793, %v977
  %v979 = vpop.f32.mrf.mxu0
  %980 = vmatprep.mubr.bf16.mxu0 0
  %981 = vmatmul.mubr.bf16.gmra.mxu0 %v851
  %v982 = vpop.f32.mrf.mxu0
  %v983 = vadd.f32 %v793, %v982
  %v984 = vpop.f32.mrf.mxu0
  %v985 = vpop.f32.mrf.mxu0
  %v986 = vadd.f32 %v793, %v985
  %v987 = vpop.f32.mrf.mxu0
  %988 = vmatprep.mubr.bf16.mxu0 0
  %989 = vmatmul.mubr.bf16.gmra.mxu0 %v854
  %v990 = vpop.f32.mrf.mxu0
  %v991 = vadd.f32 %v793, %v990
  %v992 = vpop.f32.mrf.mxu0
  %v993 = vpop.f32.mrf.mxu0
  %v994 = vadd.f32 %v793, %v993
  %v995 = vpop.f32.mrf.mxu0
  %996 = vmatprep.mubr.bf16.mxu0 0
  %997 = vmatmul.mubr.bf16.gmra.mxu0 %v857
  %v998 = vpop.f32.mrf.mxu0
  %v999 = vadd.f32 %v793, %v998
  %v1000 = vpop.f32.mrf.mxu0
  %v1001 = vpop.f32.mrf.mxu0
  %v1002 = vadd.f32 %v793, %v1001
  %v1003 = vpop.f32.mrf.mxu0
  %1004 = vmatprep.mubr.bf16.mxu0 0
  %1005 = vmatmul.mubr.bf16.gmra.mxu0 %v860
  %v1006 = vpop.f32.mrf.mxu0
  %v1007 = vadd.f32 %v793, %v1006
  %v1008 = vpop.f32.mrf.mxu0
  %v1009 = vpop.f32.mrf.mxu0
  %v1010 = vadd.f32 %v793, %v1009
  %v1011 = vpop.f32.mrf.mxu0
  %1012 = vmatprep.mubr.bf16.mxu0 0
  %1013 = vmatmul.mubr.bf16.gmra.mxu0 %v863
  %v1014 = vpop.f32.mrf.mxu0
  %v1015 = vadd.f32 %v793, %v1014
  %v1016 = vpop.f32.mrf.mxu0
  %v1017 = vpop.f32.mrf.mxu0
  %v1018 = vadd.f32 %v793, %v1017
  %v1019 = vpop.f32.mrf.mxu0
  %1020 = vmatprep.mubr.bf16.mxu0 0
  %1021 = vmatmul.mubr.bf16.gmra.mxu0 %v866
  %v1022 = vpop.f32.mrf.mxu0
  %v1023 = vadd.f32 %v793, %v1022
  %v1024 = vpop.f32.mrf.mxu0
  %v1025 = vpop.f32.mrf.mxu0
  %v1026 = vadd.f32 %v793, %v1025
  %v1027 = vpop.f32.mrf.mxu0
  %1028 = vdwg.mxu0
  %v1029 = vmax.f32 %v903, 0.0
  %v1030 = vmax.f32 %v906, 0.0
  %v1031 = vmax.f32 %v911, 0.0
  %v1032 = vmax.f32 %v914, 0.0
  %v1033 = vmax.f32 %v919, 0.0
  %v1034 = vmax.f32 %v922, 0.0
  %v1035 = vmax.f32 %v927, 0.0
  %v1036 = vmax.f32 %v930, 0.0
  %v1037 = vmax.f32 %v935, 0.0
  %v1038 = vmax.f32 %v938, 0.0
  %v1039 = vmax.f32 %v943, 0.0
  %v1040 = vmax.f32 %v946, 0.0
  %v1041 = vmax.f32 %v951, 0.0
  %v1042 = vmax.f32 %v954, 0.0
  %v1043 = vmax.f32 %v959, 0.0
  %v1044 = vmax.f32 %v962, 0.0
  %v1045 = vmax.f32 %v967, 0.0
  %v1046 = vmax.f32 %v970, 0.0
  %v1047 = vmax.f32 %v975, 0.0
  %v1048 = vmax.f32 %v978, 0.0
  %v1049 = vmax.f32 %v983, 0.0
  %v1050 = vmax.f32 %v986, 0.0
  %v1051 = vmax.f32 %v991, 0.0
  %v1052 = vmax.f32 %v994, 0.0
  %v1053 = vmax.f32 %v999, 0.0
  %v1054 = vmax.f32 %v1002, 0.0
  %v1055 = vmax.f32 %v1007, 0.0
  %v1056 = vmax.f32 %v1010, 0.0
  %v1057 = vmax.f32 %v1015, 0.0
  %v1058 = vmax.f32 %v1018, 0.0
  %v1059 = vmax.f32 %v1023, 0.0
  %v1060 = vmax.f32 %v1026, 0.0
  %v1061 = vpack.c.bf16 %v1030, %v1029
  %v1062 = vpack.c.bf16 %v1032, %v1031
  %v1063 = vpack.c.bf16 %v1034, %v1033
  %v1064 = vpack.c.bf16 %v1036, %v1035
  %v1065 = vpack.c.bf16 %v1038, %v1037
  %v1066 = vpack.c.bf16 %v1040, %v1039
  %v1067 = vpack.c.bf16 %v1042, %v1041
  %v1068 = vpack.c.bf16 %v1044, %v1043
  %v1069 = vpack.c.bf16 %v1046, %v1045
  %v1070 = vpack.c.bf16 %v1048, %v1047
  %v1071 = vpack.c.bf16 %v1050, %v1049
  %v1072 = vpack.c.bf16 %v1052, %v1051
  %v1073 = vpack.c.bf16 %v1054, %v1053
  %v1074 = vpack.c.bf16 %v1056, %v1055
  %v1075 = vpack.c.bf16 %v1058, %v1057
  %v1076 = vpack.c.bf16 %v1060, %v1059
  %v1077 = vld [vmem:[%s7] sm:$0xf]
  %v1078 = vld [vmem:[%s7 + $0x4] sm:$0xf]
  %v1079 = vld [vmem:[%s7 + $0x8] sm:$0xf]
  %v1080 = vld [vmem:[%s7 + $0xc] sm:$0xf]
  %v1082 = vlaneseq
  %v1083 = vshrl.u32 %v1082, 7
  %v1084 = vsub.s32 0, %v1083
  %v1085 = vrot.slane %v35, %v1084
  %v1091 = vunpack.c.l.b16 %v1077
  %v1092 = vunpack.c.l.b16 %v1078
  %v1093 = vunpack.c.l.b16 %v1079
  %v1094 = vunpack.c.l.b16 %v1080
  %v1095 = vpack.c.b16 %v1092, %v1091
  %v1096 = vpack.c.b16 %v1094, %v1093
  %vm1099 = vcmask 261120
  %v1101 = vsel %vm1099, %v1061, 0
  %v1104 = vsel %vm1099, %v1062, 0
  %v1107 = vsel %vm1099, %v1063, 0
  %v1110 = vsel %vm1099, %v1064, 0
  %v1113 = vsel %vm1099, %v1065, 0
  %v1116 = vsel %vm1099, %v1066, 0
  %v1119 = vsel %vm1099, %v1067, 0
  %v1122 = vsel %vm1099, %v1068, 0
  %v1125 = vsel %vm1099, %v1069, 0
  %v1128 = vsel %vm1099, %v1070, 0
  %v1131 = vsel %vm1099, %v1071, 0
  %v1134 = vsel %vm1099, %v1072, 0
  %v1137 = vsel %vm1099, %v1073, 0
  %v1140 = vsel %vm1099, %v1074, 0
  %v1143 = vsel %vm1099, %v1075, 0
  %v1146 = vsel %vm1099, %v1076, 0
  %1148 = vmatprep.subr.bf16.mxu0 0
  %1149 = vmatpush1.bf16.msra.mxu0 0
  %1150 = vmatprep.subr.bf16.mxu0 0
  %1151 = vmatpush1.bf16.msra.mxu0 0
  %1152 = vmatprep.subr.bf16.mxu0 0
  %1153 = vmatpush1.bf16.msra.mxu0 0
  %1154 = vmatprep.subr.bf16.mxu0 0
  %1155 = vmatpush1.bf16.msra.mxu0 0
  %1156 = vmatprep.subr.bf16.mxu0 0
  %1157 = vmatpush1.bf16.msra.mxu0 0
  %1158 = vmatprep.subr.bf16.mxu0 0
  %1159 = vmatpush1.bf16.msra.mxu0 0
  %1160 = vmatprep.subr.bf16.mxu0 0
  %1161 = vmatpush1.bf16.msra.mxu0 %v1096
  %1162 = vmatprep.subr.bf16.mxu0 0
  %1163 = vmatpush1.bf16.msra.mxu0 %v1095
  %1164 = vmatprep.subr.bf16.mxu0 0
  %1165 = vmatpush2.bf16.msra.mxu0 0
  %1166 = vmatprep.subr.bf16.mxu0 0
  %1167 = vmatpush2.bf16.msra.mxu0 0
  %1168 = vmatprep.subr.bf16.mxu0 0
  %1169 = vmatpush2.bf16.msra.mxu0 0
  %1170 = vmatprep.subr.bf16.mxu0 0
  %1171 = vmatpush2.bf16.msra.mxu0 0
  %1172 = vmatprep.subr.bf16.mxu0 0
  %1173 = vmatpush2.bf16.msra.mxu0 0
  %1174 = vmatprep.subr.bf16.mxu0 0
  %1175 = vmatpush2.bf16.msra.mxu0 0
  %1176 = vmatprep.subr.bf16.mxu0 0
  %1177 = vmatpush2.bf16.msra.mxu0 0
  %1178 = vmatprep.subr.bf16.mxu0 0
  %1179 = vmatpush2.bf16.msra.mxu0 0
  %1180 = vmatprep.mubr.bf16.mxu0 0
  %1181 = vmatmul.mubr.bf16.gmra.mxu0 %v1101
  %v1182 = vpop.f32.mrf.mxu0
  %v1183 = vadd.f32 %v1085, %v1182
  %v1184 = vpop.f32.mrf.mxu0
  %v1185 = vpop.f32.mrf.mxu0
  %v1186 = vadd.f32 %v1085, %v1185
  %v1187 = vpop.f32.mrf.mxu0
  %1188 = vmatprep.mubr.bf16.mxu0 0
  %1189 = vmatmul.mubr.bf16.gmra.mxu0 %v1104
  %v1190 = vpop.f32.mrf.mxu0
  %v1191 = vadd.f32 %v1085, %v1190
  %v1192 = vpop.f32.mrf.mxu0
  %v1193 = vpop.f32.mrf.mxu0
  %v1194 = vadd.f32 %v1085, %v1193
  %v1195 = vpop.f32.mrf.mxu0
  %1196 = vmatprep.mubr.bf16.mxu0 0
  %1197 = vmatmul.mubr.bf16.gmra.mxu0 %v1107
  %v1198 = vpop.f32.mrf.mxu0
  %v1199 = vadd.f32 %v1085, %v1198
  %v1200 = vpop.f32.mrf.mxu0
  %v1201 = vpop.f32.mrf.mxu0
  %v1202 = vadd.f32 %v1085, %v1201
  %v1203 = vpop.f32.mrf.mxu0
  %1204 = vmatprep.mubr.bf16.mxu0 0
  %1205 = vmatmul.mubr.bf16.gmra.mxu0 %v1110
  %v1206 = vpop.f32.mrf.mxu0
  %v1207 = vadd.f32 %v1085, %v1206
  %v1208 = vpop.f32.mrf.mxu0
  %v1209 = vpop.f32.mrf.mxu0
  %v1210 = vadd.f32 %v1085, %v1209
  %v1211 = vpop.f32.mrf.mxu0
  %1212 = vmatprep.mubr.bf16.mxu0 0
  %1213 = vmatmul.mubr.bf16.gmra.mxu0 %v1113
  %v1214 = vpop.f32.mrf.mxu0
  %v1215 = vadd.f32 %v1085, %v1214
  %v1216 = vpop.f32.mrf.mxu0
  %v1217 = vpop.f32.mrf.mxu0
  %v1218 = vadd.f32 %v1085, %v1217
  %v1219 = vpop.f32.mrf.mxu0
  %1220 = vmatprep.mubr.bf16.mxu0 0
  %1221 = vmatmul.mubr.bf16.gmra.mxu0 %v1116
  %v1222 = vpop.f32.mrf.mxu0
  %v1223 = vadd.f32 %v1085, %v1222
  %v1224 = vpop.f32.mrf.mxu0
  %v1225 = vpop.f32.mrf.mxu0
  %v1226 = vadd.f32 %v1085, %v1225
  %v1227 = vpop.f32.mrf.mxu0
  %1228 = vmatprep.mubr.bf16.mxu0 0
  %1229 = vmatmul.mubr.bf16.gmra.mxu0 %v1119
  %v1230 = vpop.f32.mrf.mxu0
  %v1231 = vadd.f32 %v1085, %v1230
  %v1232 = vpop.f32.mrf.mxu0
  %v1233 = vpop.f32.mrf.mxu0
  %v1234 = vadd.f32 %v1085, %v1233
  %v1235 = vpop.f32.mrf.mxu0
  %1236 = vmatprep.mubr.bf16.mxu0 0
  %1237 = vmatmul.mubr.bf16.gmra.mxu0 %v1122
  %v1238 = vpop.f32.mrf.mxu0
  %v1239 = vadd.f32 %v1085, %v1238
  %v1240 = vpop.f32.mrf.mxu0
  %v1241 = vpop.f32.mrf.mxu0
  %v1242 = vadd.f32 %v1085, %v1241
  %v1243 = vpop.f32.mrf.mxu0
  %1244 = vmatprep.mubr.bf16.mxu0 0
  %1245 = vmatmul.mubr.bf16.gmra.mxu0 %v1125
  %v1246 = vpop.f32.mrf.mxu0
  %v1247 = vadd.f32 %v1085, %v1246
  %v1248 = vpop.f32.mrf.mxu0
  %v1249 = vpop.f32.mrf.mxu0
  %v1250 = vadd.f32 %v1085, %v1249
  %v1251 = vpop.f32.mrf.mxu0
  %1252 = vmatprep.mubr.bf16.mxu0 0
  %1253 = vmatmul.mubr.bf16.gmra.mxu0 %v1128
  %v1254 = vpop.f32.mrf.mxu0
  %v1255 = vadd.f32 %v1085, %v1254
  %v1256 = vpop.f32.mrf.mxu0
  %v1257 = vpop.f32.mrf.mxu0
  %v1258 = vadd.f32 %v1085, %v1257
  %v1259 = vpop.f32.mrf.mxu0
  %1260 = vmatprep.mubr.bf16.mxu0 0
  %1261 = vmatmul.mubr.bf16.gmra.mxu0 %v1131
  %v1262 = vpop.f32.mrf.mxu0
  %v1263 = vadd.f32 %v1085, %v1262
  %v1264 = vpop.f32.mrf.mxu0
  %v1265 = vpop.f32.mrf.mxu0
  %v1266 = vadd.f32 %v1085, %v1265
  %v1267 = vpop.f32.mrf.mxu0
  %1268 = vmatprep.mubr.bf16.mxu0 0
  %1269 = vmatmul.mubr.bf16.gmra.mxu0 %v1134
  %v1270 = vpop.f32.mrf.mxu0
  %v1271 = vadd.f32 %v1085, %v1270
  %v1272 = vpop.f32.mrf.mxu0
  %v1273 = vpop.f32.mrf.mxu0
  %v1274 = vadd.f32 %v1085, %v1273
  %v1275 = vpop.f32.mrf.mxu0
  %1276 = vmatprep.mubr.bf16.mxu0 0
  %1277 = vmatmul.mubr.bf16.gmra.mxu0 %v1137
  %v1278 = vpop.f32.mrf.mxu0
  %v1279 = vadd.f32 %v1085, %v1278
  %v1280 = vpop.f32.mrf.mxu0
  %v1281 = vpop.f32.mrf.mxu0
  %v1282 = vadd.f32 %v1085, %v1281
  %v1283 = vpop.f32.mrf.mxu0
  %1284 = vmatprep.mubr.bf16.mxu0 0
  %1285 = vmatmul.mubr.bf16.gmra.mxu0 %v1140
  %v1286 = vpop.f32.mrf.mxu0
  %v1287 = vadd.f32 %v1085, %v1286
  %v1288 = vpop.f32.mrf.mxu0
  %v1289 = vpop.f32.mrf.mxu0
  %v1290 = vadd.f32 %v1085, %v1289
  %v1291 = vpop.f32.mrf.mxu0
  %1292 = vmatprep.mubr.bf16.mxu0 0
  %1293 = vmatmul.mubr.bf16.gmra.mxu0 %v1143
  %v1294 = vpop.f32.mrf.mxu0
  %v1295 = vadd.f32 %v1085, %v1294
  %v1296 = vpop.f32.mrf.mxu0
  %v1297 = vpop.f32.mrf.mxu0
  %v1298 = vadd.f32 %v1085, %v1297
  %v1299 = vpop.f32.mrf.mxu0
  %1300 = vmatprep.mubr.bf16.mxu0 0
  %1301 = vmatmul.mubr.bf16.gmra.mxu0 %v1146
  %v1302 = vpop.f32.mrf.mxu0
  %v1303 = vadd.f32 %v1085, %v1302
  %v1304 = vpop.f32.mrf.mxu0
  %v1305 = vpop.f32.mrf.mxu0
  %v1306 = vadd.f32 %v1085, %v1305
  %v1307 = vpop.f32.mrf.mxu0
  %1308 = vdwg.mxu0
  %1309 = vmax.xlane.f32.xlu0 %v1183
  %v1310 = vpop.xlane.xlu0 %1309
  %1311 = vmax.xlane.f32.xlu0 %v1186
  %v1312 = vpop.xlane.xlu0 %1311
  %1313 = vmax.xlane.f32.xlu0 %v1191
  %v1314 = vpop.xlane.xlu0 %1313
  %1315 = vmax.xlane.f32.xlu0 %v1194
  %v1316 = vpop.xlane.xlu0 %1315
  %1317 = vmax.xlane.f32.xlu0 %v1199
  %v1318 = vpop.xlane.xlu0 %1317
  %1319 = vmax.xlane.f32.xlu0 %v1202
  %v1320 = vpop.xlane.xlu0 %1319
  %1321 = vmax.xlane.f32.xlu0 %v1207
  %v1322 = vpop.xlane.xlu0 %1321
  %1323 = vmax.xlane.f32.xlu0 %v1210
  %v1324 = vpop.xlane.xlu0 %1323
  %1325 = vmax.xlane.f32.xlu0 %v1215
  %v1326 = vpop.xlane.xlu0 %1325
  %1327 = vmax.xlane.f32.xlu0 %v1218
  %v1328 = vpop.xlane.xlu0 %1327
  %1329 = vmax.xlane.f32.xlu0 %v1223
  %v1330 = vpop.xlane.xlu0 %1329
  %1331 = vmax.xlane.f32.xlu0 %v1226
  %v1332 = vpop.xlane.xlu0 %1331
  %1333 = vmax.xlane.f32.xlu0 %v1231
  %v1334 = vpop.xlane.xlu0 %1333
  %1335 = vmax.xlane.f32.xlu0 %v1234
  %v1336 = vpop.xlane.xlu0 %1335
  %1337 = vmax.xlane.f32.xlu0 %v1239
  %v1338 = vpop.xlane.xlu0 %1337
  %1339 = vmax.xlane.f32.xlu0 %v1242
  %v1340 = vpop.xlane.xlu0 %1339
  %1341 = vmax.xlane.f32.xlu0 %v1247
  %v1342 = vpop.xlane.xlu0 %1341
  %1343 = vmax.xlane.f32.xlu0 %v1250
  %v1344 = vpop.xlane.xlu0 %1343
  %1345 = vmax.xlane.f32.xlu0 %v1255
  %v1346 = vpop.xlane.xlu0 %1345
  %1347 = vmax.xlane.f32.xlu0 %v1258
  %v1348 = vpop.xlane.xlu0 %1347
  %1349 = vmax.xlane.f32.xlu0 %v1263
  %v1350 = vpop.xlane.xlu0 %1349
  %1351 = vmax.xlane.f32.xlu0 %v1266
  %v1352 = vpop.xlane.xlu0 %1351
  %1353 = vmax.xlane.f32.xlu0 %v1271
  %v1354 = vpop.xlane.xlu0 %1353
  %1355 = vmax.xlane.f32.xlu0 %v1274
  %v1356 = vpop.xlane.xlu0 %1355
  %1357 = vmax.xlane.f32.xlu0 %v1279
  %v1358 = vpop.xlane.xlu0 %1357
  %1359 = vmax.xlane.f32.xlu0 %v1282
  %v1360 = vpop.xlane.xlu0 %1359
  %1361 = vmax.xlane.f32.xlu0 %v1287
  %v1362 = vpop.xlane.xlu0 %1361
  %1363 = vmax.xlane.f32.xlu0 %v1290
  %v1364 = vpop.xlane.xlu0 %1363
  %1365 = vmax.xlane.f32.xlu0 %v1295
  %v1366 = vpop.xlane.xlu0 %1365
  %1367 = vmax.xlane.f32.xlu0 %v1298
  %v1368 = vpop.xlane.xlu0 %1367
  %1369 = vmax.xlane.f32.xlu0 %v1303
  %v1370 = vpop.xlane.xlu0 %1369
  %1371 = vmax.xlane.f32.xlu0 %v1306
  %v1372 = vpop.xlane.xlu0 %1371
  %v1373 = vsub.f32 %v1183, %v1310
  %v1374 = vsub.f32 %v1186, %v1312
  %v1375 = vsub.f32 %v1191, %v1314
  %v1376 = vsub.f32 %v1194, %v1316
  %v1377 = vsub.f32 %v1199, %v1318
  %v1378 = vsub.f32 %v1202, %v1320
  %v1379 = vsub.f32 %v1207, %v1322
  %v1380 = vsub.f32 %v1210, %v1324
  %v1381 = vsub.f32 %v1215, %v1326
  %v1382 = vsub.f32 %v1218, %v1328
  %v1383 = vsub.f32 %v1223, %v1330
  %v1384 = vsub.f32 %v1226, %v1332
  %v1385 = vsub.f32 %v1231, %v1334
  %v1386 = vsub.f32 %v1234, %v1336
  %v1387 = vsub.f32 %v1239, %v1338
  %v1388 = vsub.f32 %v1242, %v1340
  %v1389 = vsub.f32 %v1247, %v1342
  %v1390 = vsub.f32 %v1250, %v1344
  %v1391 = vsub.f32 %v1255, %v1346
  %v1392 = vsub.f32 %v1258, %v1348
  %v1393 = vsub.f32 %v1263, %v1350
  %v1394 = vsub.f32 %v1266, %v1352
  %v1395 = vsub.f32 %v1271, %v1354
  %v1396 = vsub.f32 %v1274, %v1356
  %v1397 = vsub.f32 %v1279, %v1358
  %v1398 = vsub.f32 %v1282, %v1360
  %v1399 = vsub.f32 %v1287, %v1362
  %v1400 = vsub.f32 %v1290, %v1364
  %v1401 = vsub.f32 %v1295, %v1366
  %v1402 = vsub.f32 %v1298, %v1368
  %v1403 = vsub.f32 %v1303, %v1370
  %v1404 = vsub.f32 %v1306, %v1372
  %v1405 = vmul.f32 %v1373, 1.442695
  %v1406 = vpow.pop %v1405
  %v1407 = vmul.f32 %v1374, 1.442695
  %v1408 = vpow.pop %v1407
  %v1409 = vmul.f32 %v1375, 1.442695
  %v1410 = vpow.pop %v1409
  %v1411 = vmul.f32 %v1376, 1.442695
  %v1412 = vpow.pop %v1411
  %v1413 = vmul.f32 %v1377, 1.442695
  %v1414 = vpow.pop %v1413
  %v1415 = vmul.f32 %v1378, 1.442695
  %v1416 = vpow.pop %v1415
  %v1417 = vmul.f32 %v1379, 1.442695
  %v1418 = vpow.pop %v1417
  %v1419 = vmul.f32 %v1380, 1.442695
  %v1420 = vpow.pop %v1419
  %v1421 = vmul.f32 %v1381, 1.442695
  %v1422 = vpow.pop %v1421
  %v1423 = vmul.f32 %v1382, 1.442695
  %v1424 = vpow.pop %v1423
  %v1425 = vmul.f32 %v1383, 1.442695
  %v1426 = vpow.pop %v1425
  %v1427 = vmul.f32 %v1384, 1.442695
  %v1428 = vpow.pop %v1427
  %v1429 = vmul.f32 %v1385, 1.442695
  %v1430 = vpow.pop %v1429
  %v1431 = vmul.f32 %v1386, 1.442695
  %v1432 = vpow.pop %v1431
  %v1433 = vmul.f32 %v1387, 1.442695
  %v1434 = vpow.pop %v1433
  %v1435 = vmul.f32 %v1388, 1.442695
  %v1436 = vpow.pop %v1435
  %v1437 = vmul.f32 %v1389, 1.442695
  %v1438 = vpow.pop %v1437
  %v1439 = vmul.f32 %v1390, 1.442695
  %v1440 = vpow.pop %v1439
  %v1441 = vmul.f32 %v1391, 1.442695
  %v1442 = vpow.pop %v1441
  %v1443 = vmul.f32 %v1392, 1.442695
  %v1444 = vpow.pop %v1443
  %v1445 = vmul.f32 %v1393, 1.442695
  %v1446 = vpow.pop %v1445
  %v1447 = vmul.f32 %v1394, 1.442695
  %v1448 = vpow.pop %v1447
  %v1449 = vmul.f32 %v1395, 1.442695
  %v1450 = vpow.pop %v1449
  %v1451 = vmul.f32 %v1396, 1.442695
  %v1452 = vpow.pop %v1451
  %v1453 = vmul.f32 %v1397, 1.442695
  %v1454 = vpow.pop %v1453
  %v1455 = vmul.f32 %v1398, 1.442695
  %v1456 = vpow.pop %v1455
  %v1457 = vmul.f32 %v1399, 1.442695
  %v1458 = vpow.pop %v1457
  %v1459 = vmul.f32 %v1400, 1.442695
  %v1460 = vpow.pop %v1459
  %v1461 = vmul.f32 %v1401, 1.442695
  %v1462 = vpow.pop %v1461
  %v1463 = vmul.f32 %v1402, 1.442695
  %v1464 = vpow.pop %v1463
  %v1465 = vmul.f32 %v1403, 1.442695
  %v1466 = vpow.pop %v1465
  %v1467 = vmul.f32 %v1404, 1.442695
  %v1468 = vpow.pop %v1467
  %1469 = vadd.xlane.f32.xlu0 %v1406
  %v1470 = vpop.xlane.xlu0 %1469
  %1471 = vadd.xlane.f32.xlu0 %v1408
  %v1472 = vpop.xlane.xlu0 %1471
  %1473 = vadd.xlane.f32.xlu0 %v1410
  %v1474 = vpop.xlane.xlu0 %1473
  %1475 = vadd.xlane.f32.xlu0 %v1412
  %v1476 = vpop.xlane.xlu0 %1475
  %1477 = vadd.xlane.f32.xlu0 %v1414
  %v1478 = vpop.xlane.xlu0 %1477
  %1479 = vadd.xlane.f32.xlu0 %v1416
  %v1480 = vpop.xlane.xlu0 %1479
  %1481 = vadd.xlane.f32.xlu0 %v1418
  %v1482 = vpop.xlane.xlu0 %1481
  %1483 = vadd.xlane.f32.xlu0 %v1420
  %v1484 = vpop.xlane.xlu0 %1483
  %1485 = vadd.xlane.f32.xlu0 %v1422
  %v1486 = vpop.xlane.xlu0 %1485
  %1487 = vadd.xlane.f32.xlu0 %v1424
  %v1488 = vpop.xlane.xlu0 %1487
  %1489 = vadd.xlane.f32.xlu0 %v1426
  %v1490 = vpop.xlane.xlu0 %1489
  %1491 = vadd.xlane.f32.xlu0 %v1428
  %v1492 = vpop.xlane.xlu0 %1491
  %1493 = vadd.xlane.f32.xlu0 %v1430
  %v1494 = vpop.xlane.xlu0 %1493
  %1495 = vadd.xlane.f32.xlu0 %v1432
  %v1496 = vpop.xlane.xlu0 %1495
  %1497 = vadd.xlane.f32.xlu0 %v1434
  %v1498 = vpop.xlane.xlu0 %1497
  %1499 = vadd.xlane.f32.xlu0 %v1436
  %v1500 = vpop.xlane.xlu0 %1499
  %1501 = vadd.xlane.f32.xlu0 %v1438
  %v1502 = vpop.xlane.xlu0 %1501
  %1503 = vadd.xlane.f32.xlu0 %v1440
  %v1504 = vpop.xlane.xlu0 %1503
  %1505 = vadd.xlane.f32.xlu0 %v1442
  %v1506 = vpop.xlane.xlu0 %1505
  %1507 = vadd.xlane.f32.xlu0 %v1444
  %v1508 = vpop.xlane.xlu0 %1507
  %1509 = vadd.xlane.f32.xlu0 %v1446
  %v1510 = vpop.xlane.xlu0 %1509
  %1511 = vadd.xlane.f32.xlu0 %v1448
  %v1512 = vpop.xlane.xlu0 %1511
  %1513 = vadd.xlane.f32.xlu0 %v1450
  %v1514 = vpop.xlane.xlu0 %1513
  %1515 = vadd.xlane.f32.xlu0 %v1452
  %v1516 = vpop.xlane.xlu0 %1515
  %1517 = vadd.xlane.f32.xlu0 %v1454
  %v1518 = vpop.xlane.xlu0 %1517
  %1519 = vadd.xlane.f32.xlu0 %v1456
  %v1520 = vpop.xlane.xlu0 %1519
  %1521 = vadd.xlane.f32.xlu0 %v1458
  %v1522 = vpop.xlane.xlu0 %1521
  %1523 = vadd.xlane.f32.xlu0 %v1460
  %v1524 = vpop.xlane.xlu0 %1523
  %1525 = vadd.xlane.f32.xlu0 %v1462
  %v1526 = vpop.xlane.xlu0 %1525
  %1527 = vadd.xlane.f32.xlu0 %v1464
  %v1528 = vpop.xlane.xlu0 %1527
  %1529 = vadd.xlane.f32.xlu0 %v1466
  %v1530 = vpop.xlane.xlu0 %1529
  %1531 = vadd.xlane.f32.xlu0 %v1468
  %v1532 = vpop.xlane.xlu0 %1531
  %v1533 = vlog2.pop %v1470
  %v1534 = vmul.f32 %v1533, 0.6931472
  %v1535 = vlog2.pop %v1472
  %v1536 = vmul.f32 %v1535, 0.6931472
  %v1537 = vlog2.pop %v1474
  %v1538 = vmul.f32 %v1537, 0.6931472
  %v1539 = vlog2.pop %v1476
  %v1540 = vmul.f32 %v1539, 0.6931472
  %v1541 = vlog2.pop %v1478
  %v1542 = vmul.f32 %v1541, 0.6931472
  %v1543 = vlog2.pop %v1480
  %v1544 = vmul.f32 %v1543, 0.6931472
  %v1545 = vlog2.pop %v1482
  %v1546 = vmul.f32 %v1545, 0.6931472
  %v1547 = vlog2.pop %v1484
  %v1548 = vmul.f32 %v1547, 0.6931472
  %v1549 = vlog2.pop %v1486
  %v1550 = vmul.f32 %v1549, 0.6931472
  %v1551 = vlog2.pop %v1488
  %v1552 = vmul.f32 %v1551, 0.6931472
  %v1553 = vlog2.pop %v1490
  %v1554 = vmul.f32 %v1553, 0.6931472
  %v1555 = vlog2.pop %v1492
  %v1556 = vmul.f32 %v1555, 0.6931472
  %v1557 = vlog2.pop %v1494
  %v1558 = vmul.f32 %v1557, 0.6931472
  %v1559 = vlog2.pop %v1496
  %v1560 = vmul.f32 %v1559, 0.6931472
  %v1561 = vlog2.pop %v1498
  %v1562 = vmul.f32 %v1561, 0.6931472
  %v1563 = vlog2.pop %v1500
  %v1564 = vmul.f32 %v1563, 0.6931472
  %v1565 = vlog2.pop %v1502
  %v1566 = vmul.f32 %v1565, 0.6931472
  %v1567 = vlog2.pop %v1504
  %v1568 = vmul.f32 %v1567, 0.6931472
  %v1569 = vlog2.pop %v1506
  %v1570 = vmul.f32 %v1569, 0.6931472
  %v1571 = vlog2.pop %v1508
  %v1572 = vmul.f32 %v1571, 0.6931472
  %v1573 = vlog2.pop %v1510
  %v1574 = vmul.f32 %v1573, 0.6931472
  %v1575 = vlog2.pop %v1512
  %v1576 = vmul.f32 %v1575, 0.6931472
  %v1577 = vlog2.pop %v1514
  %v1578 = vmul.f32 %v1577, 0.6931472
  %v1579 = vlog2.pop %v1516
  %v1580 = vmul.f32 %v1579, 0.6931472
  %v1581 = vlog2.pop %v1518
  %v1582 = vmul.f32 %v1581, 0.6931472
  %v1583 = vlog2.pop %v1520
  %v1584 = vmul.f32 %v1583, 0.6931472
  %v1585 = vlog2.pop %v1522
  %v1586 = vmul.f32 %v1585, 0.6931472
  %v1587 = vlog2.pop %v1524
  %v1588 = vmul.f32 %v1587, 0.6931472
  %v1589 = vlog2.pop %v1526
  %v1590 = vmul.f32 %v1589, 0.6931472
  %v1591 = vlog2.pop %v1528
  %v1592 = vmul.f32 %v1591, 0.6931472
  %v1593 = vlog2.pop %v1530
  %v1594 = vmul.f32 %v1593, 0.6931472
  %v1595 = vlog2.pop %v1532
  %v1596 = vmul.f32 %v1595, 0.6931472
  %v1597 = vsub.f32 %v1373, %v1534
  %v1598 = vsub.f32 %v1374, %v1536
  %v1599 = vsub.f32 %v1375, %v1538
  %v1600 = vsub.f32 %v1376, %v1540
  %v1601 = vsub.f32 %v1377, %v1542
  %v1602 = vsub.f32 %v1378, %v1544
  %v1603 = vsub.f32 %v1379, %v1546
  %v1604 = vsub.f32 %v1380, %v1548
  %v1605 = vsub.f32 %v1381, %v1550
  %v1606 = vsub.f32 %v1382, %v1552
  %v1607 = vsub.f32 %v1383, %v1554
  %v1608 = vsub.f32 %v1384, %v1556
  %v1609 = vsub.f32 %v1385, %v1558
  %v1610 = vsub.f32 %v1386, %v1560
  %v1611 = vsub.f32 %v1387, %v1562
  %v1612 = vsub.f32 %v1388, %v1564
  %v1613 = vsub.f32 %v1389, %v1566
  %v1614 = vsub.f32 %v1390, %v1568
  %v1615 = vsub.f32 %v1391, %v1570
  %v1616 = vsub.f32 %v1392, %v1572
  %v1617 = vsub.f32 %v1393, %v1574
  %v1618 = vsub.f32 %v1394, %v1576
  %v1619 = vsub.f32 %v1395, %v1578
  %v1620 = vsub.f32 %v1396, %v1580
  %v1621 = vsub.f32 %v1397, %v1582
  %v1622 = vsub.f32 %v1398, %v1584
  %v1623 = vsub.f32 %v1399, %v1586
  %v1624 = vsub.f32 %v1400, %v1588
  %v1625 = vsub.f32 %v1401, %v1590
  %v1626 = vsub.f32 %v1402, %v1592
  %v1627 = vsub.f32 %v1403, %v1594
  %v1628 = vsub.f32 %v1404, %v1596
  %1629 = vst [vmem:[%s9] sm:$0xff] %v1597
  %1630 = vst [vmem:[%s9 + $0x8] sm:$0xff] %v1598
  %1631 = vst [vmem:[%s9 + $0x10] sm:$0xff] %v1599
  %1632 = vst [vmem:[%s9 + $0x18] sm:$0xff] %v1600
  %1633 = vst [vmem:[%s9 + $0x20] sm:$0xff] %v1601
  %1634 = vst [vmem:[%s9 + $0x28] sm:$0xff] %v1602
  %1635 = vst [vmem:[%s9 + $0x30] sm:$0xff] %v1603
  %1636 = vst [vmem:[%s9 + $0x38] sm:$0xff] %v1604
  %1637 = vst [vmem:[%s9 + $0x40] sm:$0xff] %v1605
  %1638 = vst [vmem:[%s9 + $0x48] sm:$0xff] %v1606
  %1639 = vst [vmem:[%s9 + $0x50] sm:$0xff] %v1607
  %1640 = vst [vmem:[%s9 + $0x58] sm:$0xff] %v1608
  %1641 = vst [vmem:[%s9 + $0x60] sm:$0xff] %v1609
  %1642 = vst [vmem:[%s9 + $0x68] sm:$0xff] %v1610
  %1643 = vst [vmem:[%s9 + $0x70] sm:$0xff] %v1611
  %1644 = vst [vmem:[%s9 + $0x78] sm:$0xff] %v1612
  %1645 = vst [vmem:[%s9 + $0x80] sm:$0xff] %v1613
  %1646 = vst [vmem:[%s9 + $0x88] sm:$0xff] %v1614
  %1647 = vst [vmem:[%s9 + $0x90] sm:$0xff] %v1615
  %1648 = vst [vmem:[%s9 + $0x98] sm:$0xff] %v1616
  %1649 = vst [vmem:[%s9 + $0xa0] sm:$0xff] %v1617
  %1650 = vst [vmem:[%s9 + $0xa8] sm:$0xff] %v1618
  %1651 = vst [vmem:[%s9 + $0xb0] sm:$0xff] %v1619
  %1652 = vst [vmem:[%s9 + $0xb8] sm:$0xff] %v1620
  %1653 = vst [vmem:[%s9 + $0xc0] sm:$0xff] %v1621
  %1654 = vst [vmem:[%s9 + $0xc8] sm:$0xff] %v1622
  %1655 = vst [vmem:[%s9 + $0xd0] sm:$0xff] %v1623
  %1656 = vst [vmem:[%s9 + $0xd8] sm:$0xff] %v1624
  %1657 = vst [vmem:[%s9 + $0xe0] sm:$0xff] %v1625
  %1658 = vst [vmem:[%s9 + $0xe8] sm:$0xff] %v1626
  %1659 = vst [vmem:[%s9 + $0xf0] sm:$0xff] %v1627
  %1660 = vst [vmem:[%s9 + $0xf8] sm:$0xff] %v1628
  // Predicated region
  $region38: #{homogeneous_edge_prediction_classifier.1} parent=0 // pred_check
    _
  $region39: #{homogeneous_edge_prediction_classifier.1} parent=0 // pred_check_branch
    %1662 = sbr.rel (0) target = $region41
  $region40: #{homogeneous_edge_prediction_classifier.1} parent=0 // pred_region
    _
  $region41: #{homogeneous_edge_prediction_classifier.1} parent=0 // pred_fallthru
    _
  // Predicated region
  $region42: #{homogeneous_edge_prediction_classifier.1} parent=0 // pred_check
    _
  $region43: #{homogeneous_edge_prediction_classifier.1} parent=0 // pred_check_branch
    %1664 = sbr.rel (0) target = $region45
  $region44: #{homogeneous_edge_prediction_classifier.1} parent=0 // pred_region
    _
  $region45: #{homogeneous_edge_prediction_classifier.1} parent=0 // pred_fallthru
    _

</llo_original>
